<compile_context>
chip_gen: v5e
topology: v5e:2x2
jax: 0.10.0
libtpu: 0.0.40
codegen_flags: <defaults>
</compile_context>

<pallas_src>
import functools

import jax
import jax.numpy as jnp
import numpy as np
from jax.experimental import pallas as pl
from jax.experimental.pallas import tpu as pltpu

_EPS = 1e-5


# ----------------------------------------------------------------------------
# Model structure helpers
# ----------------------------------------------------------------------------
def block_channels(i_block, base_filters, increasefilter_gap):
    if i_block == 0:
        return base_filters, base_filters
    in_c = int(base_filters * 2 ** ((i_block - 1) // increasefilter_gap))
    out_c = in_c * 2 if (i_block % increasefilter_gap == 0) else in_c
    return in_c, out_c


def _block_meta(cfg):
    metas = []
    for i_block in range(cfg["n_block"]):
        downsample = (i_block % cfg["downsample_gap"]) == 1
        metas.append(dict(
            is_first=(i_block == 0),
            downsample=downsample,
            stride=cfg["stride"] if downsample else 1,
        ))
    return metas


def _fold_bn(bn, eps=_EPS):
    scale = bn["gamma"].astype(jnp.float32) / jnp.sqrt(
        bn["var"].astype(jnp.float32) + eps)
    shift = bn["beta"].astype(jnp.float32) - bn["mean"].astype(jnp.float32) * scale
    return scale, shift


def _fuse_conv(w, b, scale=None, shift=None):
    """(C_out, C_in, K) conv weight (+ optional following-BN fold) ->
    (C_out, K*C_in) tap-major fused weight and (C_out, 1) bias column."""
    w = w.astype(jnp.float32)
    b = b.astype(jnp.float32)
    if scale is not None:
        w = w * scale[:, None, None]
        b = b * scale + shift
    c_out = w.shape[0]
    wf = jnp.transpose(w, (0, 2, 1)).reshape(c_out, -1)     # col = k*C_in + c_in
    return wf, b.reshape(-1, 1)


# ----------------------------------------------------------------------------
# Trace-time constant selection matrices (numpy -> embedded in the param slab)
# ----------------------------------------------------------------------------
def _np_downsample(stride, l_in, slot, n_slots):
    """(n_slots*slot, n_slots*slot): output lane q = slot(q)*slot + o picks
    source lane slot(q)*slot + o*stride (per-sample strided subsampling)."""
    lanes = n_slots * slot
    l_out = -(-l_in // stride)
    d = np.zeros((lanes, lanes), np.float32)
    for s in range(n_slots):
        for o in range(l_out):
            src = o * stride
            if src < l_in:
                d[s * slot + src, s * slot + o] = 1.0
    return d


def _np_gap(l_last, slot, n_slots):
    lanes = n_slots * slot
    g = np.zeros((lanes, n_slots), np.float32)
    for s in range(n_slots):
        g[s * slot:s * slot + l_last, s] = 1.0 / float(l_last)
    return g


def _np_chpad(c_in, c_out):
    e = np.zeros((c_out, c_in), np.float32)
    ch1 = (c_out - c_in) // 2
    for j in range(c_in):
        e[ch1 + j, j] = 1.0
    return e


# ----------------------------------------------------------------------------
# Fused forward pass (single Pallas kernel)
# ----------------------------------------------------------------------------
def adsb_forward_fused(x, params, cfg):
    B, c_in0, L = x.shape
    K = cfg["kernel_size"]
    n_classes = cfg["n_classes"]
    metas = _block_meta(cfg)
    lanes = B * L
    # TODO(synk): grouped conv (groups > 1) not implemented; cfg uses groups=1.
    # TODO(synk): training-mode BatchNorm / active Dropout not implemented
    #             (inference semantics only).

    # ---- batch packed along lanes: (B, C, L) -> (C_pad, B*L), C padded to 8 ----
    c_pad = -(-c_in0 // 8) * 8
    xp = jnp.transpose(x.astype(jnp.float32), (1, 0, 2)).reshape(c_in0, lanes)
    xp = jnp.pad(xp, ((0, c_pad - c_in0), (0, 0)))

    # ---- single lane-dense parameter slab ------------------------------------
    slab_w = 128
    entries, plan = [], {}
    row_cursor = [0]

    def add(name, arr):
        arr = jnp.asarray(arr, jnp.float32)
        r, c = arr.shape
        assert c <= slab_w
        rp = -(-r // 8) * 8                       # keep row offsets 8-aligned
        plan[name] = (row_cursor[0], r, c)
        entries.append(jnp.pad(arr, ((0, rp - r), (0, slab_w - c))))
        row_cursor[0] += rp

    # first conv (+ first BN folded), input channels zero-padded to c_pad
    s0, t0 = _fold_bn(params["first_bn"])
    w0 = jnp.pad(params["first_conv_w"].astype(jnp.float32),
                 ((0, 0), (0, c_pad - c_in0), (0, 0)))
    wf, bf = _fuse_conv(w0, params["first_conv_b"], s0, t0)
    add("conv0", jnp.concatenate([wf, bf], axis=1))

    for i, meta in enumerate(metas):
        blk = params["blocks"][i]
        if not meta["is_first"]:
            s1, t1 = _fold_bn(blk["bn1"])
            add(f"bn1_{i}", jnp.concatenate([s1[:, None], t1[:, None]], axis=1))
        s2, t2 = _fold_bn(blk["bn2"])
        w1, b1 = _fuse_conv(blk["conv1_w"], blk["conv1_b"], s2, t2)
        add(f"conv1_{i}", jnp.concatenate([w1, b1], axis=1))
        w2, b2 = _fuse_conv(blk["conv2_w"], blk["conv2_b"])
        add(f"conv2_{i}", jnp.concatenate([w2, b2], axis=1))

    sF, tF = _fold_bn(params["final_bn"])
    add("bnF", jnp.concatenate([sF[:, None], tF[:, None]], axis=1))
    add("dense", jnp.concatenate([params["dense_w"].astype(jnp.float32),
                                  params["dense_b"].astype(jnp.float32)[:, None]],
                                 axis=1))

    # downsample / GAP / channel-pad selection matrices (compile-time constants)
    l_sim = L
    for i, meta in enumerate(metas):
        if meta["downsample"]:
            add(f"ds_{i}", _np_downsample(meta["stride"], l_sim, L, B))
        l_sim = -(-l_sim // meta["stride"])
    add("gap", _np_gap(l_sim, L, B))
    for i in range(cfg["n_block"]):
        in_c, out_c = block_channels(i, cfg["base_filters"], cfg["increasefilter_gap"])
        if in_c != out_c:
            add(f"chpad_{i}", _np_chpad(in_c, out_c))

    slab = jnp.concatenate(entries, axis=0)

    # --------------------------------- kernel ---------------------------------
    def kernel(x_ref, p_ref, o_ref):
        lane = jax.lax.broadcasted_iota(jnp.int32, (1, lanes), 1)
        pos = lane % L                          # position inside the sample slot
        mask_cache = {}

        def get(name):
            r0, r, c = plan[name]
            return p_ref[r0:r0 + r, 0:c]

        def tap_mask(d, l_cur):
            key = (d, l_cur)
            if key not in mask_cache:
                mask_cache[key] = ((pos + d >= 0) & (pos + d < l_cur)
                                   ).astype(jnp.float32)
            return mask_cache[key]

        def shift(a, d, l_cur):
            """out[:, p] = a[:, p + d] within the sample slot, 0 outside
            [0, l_cur) -> exact per-sample SAME zero padding."""
            if d == 0:
                return a
            rolled = pltpu.roll(a, shift=(-d) % lanes, axis=1)
            return rolled * tap_mask(d, l_cur)

        def conv1d(a, name, l_cur, stride=1, ds=None):
            """SAME conv1d on slot-packed activations; one fused MXU matmul."""
            r0, r, c = plan[name]
            kcin = c - 1
            c_in = a.shape[0]
            assert kcin == K * c_in
            w = p_ref[r0:r0 + r, 0:kcin]
            b = p_ref[r0:r0 + r, kcin:kcin + 1]
            l_out = -(-l_cur // stride)
            p_tot = max(0, (l_out - 1) * stride + K - l_cur)
            pad_l = p_tot // 2
            taps = [shift(a, k - pad_l, l_cur) for k in range(K)]
            im2col = jnp.concatenate(taps, axis=0)            # (K*C_in, lanes)
            out = jnp.dot(w, im2col, preferred_element_type=jnp.float32) + b
            if stride > 1:
                # strided conv == full-resolution conv + per-slot subsampling
                out = jnp.dot(out, ds, preferred_element_type=jnp.float32)
            return out, l_out

        def maxpool(a, pool, l_cur, ds):
            m = a
            for j in range(1, pool):
                m = jnp.maximum(m, shift(a, j, l_cur))
            return jnp.dot(m, ds, preferred_element_type=jnp.float32)

        # ------------------------------ network ------------------------------
        a = x_ref[...]                                         # (c_pad, lanes)
        a, l_cur = conv1d(a, "conv0", L)
        a = jnp.maximum(a, 0.0)

        for i, meta in enumerate(metas):
            identity, l_id = a, l_cur
            h = a
            if not meta["is_first"]:
                st = get(f"bn1_{i}")
                h = jnp.maximum(h * st[:, 0:1] + st[:, 1:2], 0.0)
            ds = get(f"ds_{i}") if meta["downsample"] else None
            h, l_new = conv1d(h, f"conv1_{i}", l_cur, meta["stride"], ds)
            h = jnp.maximum(h, 0.0)           # Dropout = identity at inference
            h, _ = conv1d(h, f"conv2_{i}", l_new)
            if meta["downsample"]:
                identity = maxpool(identity, meta["stride"], l_id, ds)
            if h.shape[0] != identity.shape[0]:
                identity = jnp.dot(get(f"chpad_{i}"), identity,
                                   preferred_element_type=jnp.float32)
            a = h + identity
            l_cur = l_new

        st = get("bnF")
        a = jnp.maximum(a * st[:, 0:1] + st[:, 1:2], 0.0)

        # global average pool (only active lanes of each slot) + dense head
        pooled = jnp.dot(a, get("gap"),
                         preferred_element_type=jnp.float32)  # (C_last, B)
        dw = get("dense")
        logits = jnp.dot(dw[:, :-1], pooled,
                         preferred_element_type=jnp.float32) + dw[:, -1:]
        o_ref[...] = logits                   # (n_classes, B), one dense store

    out_t = pl.pallas_call(
        kernel,
        out_shape=jax.ShapeDtypeStruct((n_classes, B), jnp.float32),
    )(xp, slab)
    return out_t.T                                             # (B, n_classes)


# ----------------------------------------------------------------------------
# Pure-JAX (XLA conv) reference for correctness check
# ----------------------------------------------------------------------------
def ref_forward(x, params, cfg):
    def conv(x, w, b, stride):
        L = x.shape[-1]
        K = w.shape[-1]
        out_dim = -(-L // stride)
        p = max(0, (out_dim - 1) * stride + K - L)
        y = jax.lax.conv_general_dilated(
            x, w, window_strides=(stride,), padding=[(p // 2, p - p // 2)],
            dimension_numbers=("NCH", "OIH", "NCH"))
        return y + b[None, :, None]

    def bnrelu(x, bn, eps=_EPS):
        s = bn["gamma"] / jnp.sqrt(bn["var"] + eps)
        t = bn["beta"] - bn["mean"] * s
        return jnp.maximum(x * s[None, :, None] + t[None, :, None], 0.0)

    def mpool(x, pool):
        B, C, L = x.shape
        p = pool - 1
        xp = jnp.pad(x, ((0, 0), (0, 0), (p // 2, p - p // 2)))
        out_dim = (L + p - pool) // pool + 1
        xp = xp[:, :, : out_dim * pool]
        return jnp.max(xp.reshape(B, C, out_dim, pool), axis=-1)

    out = conv(x, params["first_conv_w"], params["first_conv_b"], 1)
    out = bnrelu(out, params["first_bn"])
    for i_block in range(cfg["n_block"]):
        blk = params["blocks"][i_block]
        is_first = i_block == 0
        downsample = (i_block % cfg["downsample_gap"]) == 1
        stride_eff = cfg["stride"] if downsample else 1
        identity = out
        h = out
        if not is_first:
            h = bnrelu(h, blk["bn1"])
        h = conv(h, blk["conv1_w"], blk["conv1_b"], stride_eff)
        h = bnrelu(h, blk["bn2"])
        h = conv(h, blk["conv2_w"], blk["conv2_b"], 1)
        if downsample:
            identity = mpool(identity, stride_eff)
        in_c, out_c = identity.shape[1], h.shape[1]
        if out_c != in_c:
            ch1 = (out_c - in_c) // 2
            identity = jnp.pad(identity, ((0, 0), (ch1, out_c - in_c - ch1), (0, 0)))
        out = h + identity
    out = bnrelu(out, params["final_bn"])
    m = jnp.mean(out, axis=-1)
    return m @ params["dense_w"].T + params["dense_b"]


# ----------------------------------------------------------------------------
# Deterministic parameter init
# ----------------------------------------------------------------------------
def init_params(key, cfg):
    keys = iter(jax.random.split(key, 512))

    def nrm(shape, scale=0.1):
        return (scale * jax.random.normal(next(keys), shape)).astype(jnp.float32)

    def bn_params(c):
        return dict(
            gamma=(1.0 + 0.05 * jax.random.normal(next(keys), (c,))).astype(jnp.float32),
            beta=nrm((c,), 0.05),
            mean=nrm((c,), 0.1),
            var=(0.5 + jax.random.uniform(next(keys), (c,))).astype(jnp.float32),
        )

    K = cfg["kernel_size"]
    params = dict(
        first_conv_w=nrm((cfg["base_filters"], cfg["in_channels"], K)),
        first_conv_b=nrm((cfg["base_filters"],), 0.05),
        first_bn=bn_params(cfg["base_filters"]),
        blocks=[],
    )
    out_c = cfg["base_filters"]
    for i_block in range(cfg["n_block"]):
        in_c, out_c = block_channels(i_block, cfg["base_filters"], cfg["increasefilter_gap"])
        params["blocks"].append(dict(
            bn1=bn_params(in_c),
            conv1_w=nrm((out_c, in_c, K)),
            conv1_b=nrm((out_c,), 0.05),
            bn2=bn_params(out_c),
            conv2_w=nrm((out_c, out_c, K)),
            conv2_b=nrm((out_c,), 0.05),
        ))
    params["final_bn"] = bn_params(out_c)
    params["dense_w"] = nrm((cfg["n_classes"], out_c))
    params["dense_b"] = nrm((cfg["n_classes"],), 0.05)
    return params


# ----------------------------------------------------------------------------
# Main
# ----------------------------------------------------------------------------
if __name__ == "__main__":
    # small synthetic model config (config.model.*), groups fixed to 1
    cfg = dict(
        in_channels=2,
        base_filters=8,
        kernel_size=3,
        stride=2,
        groups=1,            # TODO(synk): grouped conv (groups>1) not implemented
        n_block=5,
        n_classes=5,
        downsample_gap=2,
        increasefilter_gap=4,
    )

    key = jax.random.PRNGKey(0)
    kx, kp = jax.random.split(key)
    x = jax.random.normal(kx, (2, cfg["in_channels"], 64), dtype=jnp.float32)
    params = init_params(kp, cfg)

    fwd = jax.jit(functools.partial(adsb_forward_fused, cfg=cfg))
    out = jax.block_until_ready(fwd(x, params))

    ref = jax.block_until_ready(ref_forward(x, params, cfg))
    assert out.shape == (2, cfg["n_classes"]), out.shape
    np.testing.assert_allclose(np.asarray(out), np.asarray(ref), rtol=2e-3, atol=2e-3)

    print("KERNEL_OK")
</pallas_src>

<mosaic_0001>
module attributes {stable_mosaic.version = 11 : i64} {
  func.func @kernel(%arg0: memref<8x128xf32, #tpu.memory_space<vmem>>, %arg1: memref<560x128xf32, #tpu.memory_space<vmem>>, %arg2: memref<5x2xf32, #tpu.memory_space<vmem>>) attributes {dimension_semantics = [], scalar_prefetch = 0 : i64, scratch_operands = 0 : i64, tpu.core_type = #tpu.core_type<tc>} {
    %0 = tpu.iota {dimensions = array<i32: 1>} : vector<1x128xi32>
    %c64_i32 = arith.constant 64 : i32
    %c0_i32 = arith.constant 0 : i32
    %1 = arith.cmpi eq, %c64_i32, %c0_i32 : i32
    %c1_i32 = arith.constant 1 : i32
    %2 = arith.select %1, %c1_i32, %c64_i32 : i32
    %3 = vector.broadcast %2 : i32 to vector<1x128xi32>
    %4 = arith.remsi %0, %3 : vector<1x128xi32>
    %c0_i32_0 = arith.constant 0 : i32
    %5 = vector.broadcast %c0_i32_0 : i32 to vector<1x128xi32>
    %6 = arith.cmpi ne, %4, %5 : vector<1x128xi32>
    %c0_i32_1 = arith.constant 0 : i32
    %7 = vector.broadcast %c0_i32_1 : i32 to vector<1x128xi32>
    %8 = arith.cmpi slt, %4, %7 : vector<1x128xi32>
    %c0_i32_2 = arith.constant 0 : i32
    %9 = arith.cmpi slt, %2, %c0_i32_2 : i32
    %10 = vector.broadcast %9 : i1 to vector<1x128xi1>
    %11 = vector.broadcast %10 : vector<1x128xi1> to vector<1x128xi1>
    %12 = arith.xori %8, %11 : vector<1x128xi1>
    %13 = arith.andi %12, %6 : vector<1x128xi1>
    %14 = vector.broadcast %2 : i32 to vector<1x128xi32>
    %15 = arith.addi %4, %14 : vector<1x128xi32>
    %16 = arith.select %13, %15, %4 : vector<1x128xi1>, vector<1x128xi32>
    %c0 = arith.constant 0 : index
    %c0_3 = arith.constant 0 : index
    %17 = vector.load %arg0[%c0, %c0_3] : memref<8x128xf32, #tpu.memory_space<vmem>>, vector<8x128xf32>
    %c0_4 = arith.constant 0 : index
    %c0_5 = arith.constant 0 : index
    %18 = vector.load %arg1[%c0_4, %c0_5] : memref<560x128xf32, #tpu.memory_space<vmem>>, vector<8x24xf32>
    %c0_6 = arith.constant 0 : index
    %c24 = arith.constant 24 : index
    %19 = vector.load %arg1[%c0_6, %c24] : memref<560x128xf32, #tpu.memory_space<vmem>>, vector<8x1xf32>
    %c1_i32_7 = arith.constant 1 : i32
    %20 = tpu.dynamic_rotate %17 by %c1_i32_7 dim 1 : vector<8x128xf32>, i32 -> vector<8x128xf32>
    %c-1_i32 = arith.constant -1 : i32
    %21 = vector.broadcast %c-1_i32 : i32 to vector<1x128xi32>
    %22 = arith.addi %16, %21 : vector<1x128xi32>
    %c0_i32_8 = arith.constant 0 : i32
    %23 = vector.broadcast %c0_i32_8 : i32 to vector<1x128xi32>
    %24 = arith.cmpi sge, %22, %23 : vector<1x128xi32>
    %c-1_i32_9 = arith.constant -1 : i32
    %25 = vector.broadcast %c-1_i32_9 : i32 to vector<1x128xi32>
    %26 = arith.addi %16, %25 : vector<1x128xi32>
    %c64_i32_10 = arith.constant 64 : i32
    %27 = vector.broadcast %c64_i32_10 : i32 to vector<1x128xi32>
    %28 = arith.cmpi slt, %26, %27 : vector<1x128xi32>
    %29 = arith.andi %24, %28 : vector<1x128xi1>
    %30 = arith.extui %29 : vector<1x128xi1> to vector<1x128xi32>
    %31 = arith.sitofp %30 : vector<1x128xi32> to vector<1x128xf32>
    %32 = vector.broadcast %31 : vector<1x128xf32> to vector<8x128xf32>
    %33 = arith.mulf %20, %32 : vector<8x128xf32>
    %c127_i32 = arith.constant 127 : i32
    %34 = tpu.dynamic_rotate %17 by %c127_i32 dim 1 : vector<8x128xf32>, i32 -> vector<8x128xf32>
    %c1_i32_11 = arith.constant 1 : i32
    %35 = vector.broadcast %c1_i32_11 : i32 to vector<1x128xi32>
    %36 = arith.addi %16, %35 : vector<1x128xi32>
    %c0_i32_12 = arith.constant 0 : i32
    %37 = vector.broadcast %c0_i32_12 : i32 to vector<1x128xi32>
    %38 = arith.cmpi sge, %36, %37 : vector<1x128xi32>
    %c1_i32_13 = arith.constant 1 : i32
    %39 = vector.broadcast %c1_i32_13 : i32 to vector<1x128xi32>
    %40 = arith.addi %16, %39 : vector<1x128xi32>
    %c64_i32_14 = arith.constant 64 : i32
    %41 = vector.broadcast %c64_i32_14 : i32 to vector<1x128xi32>
    %42 = arith.cmpi slt, %40, %41 : vector<1x128xi32>
    %43 = arith.andi %38, %42 : vector<1x128xi1>
    %44 = arith.extui %43 : vector<1x128xi1> to vector<1x128xi32>
    %45 = arith.sitofp %44 : vector<1x128xi32> to vector<1x128xf32>
    %46 = vector.broadcast %45 : vector<1x128xf32> to vector<8x128xf32>
    %47 = arith.mulf %34, %46 : vector<8x128xf32>
    %48 = tpu.concatenate %33, %17, %47 in 0 : vector<8x128xf32>, vector<8x128xf32>, vector<8x128xf32> -> vector<24x128xf32>
    %cst = arith.constant dense<0.000000e+00> : vector<8x128xf32>
    %49 = tpu.matmul %18, %48, %cst {dimension_numbers = #tpu.dot_dimension_numbers<[1], [0], [0], [1], [0, 0, 1, 1], [], []>} : vector<8x24xf32>, vector<24x128xf32>, vector<8x128xf32> -> vector<8x128xf32>
    %50 = vector.broadcast %19 : vector<8x1xf32> to vector<8x128xf32>
    %51 = arith.addf %49, %50 : vector<8x128xf32>
    %cst_15 = arith.constant 0.000000e+00 : f32
    %52 = vector.broadcast %cst_15 : f32 to vector<8x128xf32>
    %53 = arith.maximumf %51, %52 : vector<8x128xf32>
    %c8 = arith.constant 8 : index
    %c0_16 = arith.constant 0 : index
    %54 = vector.load %arg1[%c8, %c0_16] : memref<560x128xf32, #tpu.memory_space<vmem>>, vector<8x24xf32>
    %c8_17 = arith.constant 8 : index
    %c24_18 = arith.constant 24 : index
    %55 = vector.load %arg1[%c8_17, %c24_18] : memref<560x128xf32, #tpu.memory_space<vmem>>, vector<8x1xf32>
    %c1_i32_19 = arith.constant 1 : i32
    %56 = tpu.dynamic_rotate %53 by %c1_i32_19 dim 1 : vector<8x128xf32>, i32 -> vector<8x128xf32>
    %57 = vector.broadcast %31 : vector<1x128xf32> to vector<8x128xf32>
    %58 = arith.mulf %56, %57 : vector<8x128xf32>
    %c127_i32_20 = arith.constant 127 : i32
    %59 = tpu.dynamic_rotate %53 by %c127_i32_20 dim 1 : vector<8x128xf32>, i32 -> vector<8x128xf32>
    %60 = vector.broadcast %45 : vector<1x128xf32> to vector<8x128xf32>
    %61 = arith.mulf %59, %60 : vector<8x128xf32>
    %62 = tpu.concatenate %58, %53, %61 in 0 : vector<8x128xf32>, vector<8x128xf32>, vector<8x128xf32> -> vector<24x128xf32>
    %cst_21 = arith.constant dense<0.000000e+00> : vector<8x128xf32>
    %63 = tpu.matmul %54, %62, %cst_21 {dimension_numbers = #tpu.dot_dimension_numbers<[1], [0], [0], [1], [0, 0, 1, 1], [], []>} : vector<8x24xf32>, vector<24x128xf32>, vector<8x128xf32> -> vector<8x128xf32>
    %64 = vector.broadcast %55 : vector<8x1xf32> to vector<8x128xf32>
    %65 = arith.addf %63, %64 : vector<8x128xf32>
    %cst_22 = arith.constant 0.000000e+00 : f32
    %66 = vector.broadcast %cst_22 : f32 to vector<8x128xf32>
    %67 = arith.maximumf %65, %66 : vector<8x128xf32>
    %c16 = arith.constant 16 : index
    %c0_23 = arith.constant 0 : index
    %68 = vector.load %arg1[%c16, %c0_23] : memref<560x128xf32, #tpu.memory_space<vmem>>, vector<8x24xf32>
    %c16_24 = arith.constant 16 : index
    %c24_25 = arith.constant 24 : index
    %69 = vector.load %arg1[%c16_24, %c24_25] : memref<560x128xf32, #tpu.memory_space<vmem>>, vector<8x1xf32>
    %c1_i32_26 = arith.constant 1 : i32
    %70 = tpu.dynamic_rotate %67 by %c1_i32_26 dim 1 : vector<8x128xf32>, i32 -> vector<8x128xf32>
    %71 = vector.broadcast %31 : vector<1x128xf32> to vector<8x128xf32>
    %72 = arith.mulf %70, %71 : vector<8x128xf32>
    %c127_i32_27 = arith.constant 127 : i32
    %73 = tpu.dynamic_rotate %67 by %c127_i32_27 dim 1 : vector<8x128xf32>, i32 -> vector<8x128xf32>
    %74 = vector.broadcast %45 : vector<1x128xf32> to vector<8x128xf32>
    %75 = arith.mulf %73, %74 : vector<8x128xf32>
    %76 = tpu.concatenate %72, %67, %75 in 0 : vector<8x128xf32>, vector<8x128xf32>, vector<8x128xf32> -> vector<24x128xf32>
    %cst_28 = arith.constant dense<0.000000e+00> : vector<8x128xf32>
    %77 = tpu.matmul %68, %76, %cst_28 {dimension_numbers = #tpu.dot_dimension_numbers<[1], [0], [0], [1], [0, 0, 1, 1], [], []>} : vector<8x24xf32>, vector<24x128xf32>, vector<8x128xf32> -> vector<8x128xf32>
    %78 = vector.broadcast %69 : vector<8x1xf32> to vector<8x128xf32>
    %79 = arith.addf %77, %78 : vector<8x128xf32>
    %80 = arith.addf %79, %53 : vector<8x128xf32>
    %c24_29 = arith.constant 24 : index
    %c0_30 = arith.constant 0 : index
    %81 = vector.load %arg1[%c24_29, %c0_30] : memref<560x128xf32, #tpu.memory_space<vmem>>, vector<8x2xf32>
    %82 = vector.extract_strided_slice %81 {offsets = [0, 0], sizes = [8, 1], strides = [1, 1]} : vector<8x2xf32> to vector<8x1xf32>
    %83 = vector.broadcast %82 : vector<8x1xf32> to vector<8x128xf32>
    %84 = arith.mulf %80, %83 : vector<8x128xf32>
    %85 = vector.extract_strided_slice %81 {offsets = [0, 1], sizes = [8, 1], strides = [1, 1]} : vector<8x2xf32> to vector<8x1xf32>
    %86 = vector.broadcast %85 : vector<8x1xf32> to vector<8x128xf32>
    %87 = arith.addf %84, %86 : vector<8x128xf32>
    %cst_31 = arith.constant 0.000000e+00 : f32
    %88 = vector.broadcast %cst_31 : f32 to vector<8x128xf32>
    %89 = arith.maximumf %87, %88 : vector<8x128xf32>
    %c160 = arith.constant 160 : index
    %c0_32 = arith.constant 0 : index
    %90 = vector.load %arg1[%c160, %c0_32] : memref<560x128xf32, #tpu.memory_space<vmem>>, vector<128x128xf32>
    %c32 = arith.constant 32 : index
    %c0_33 = arith.constant 0 : index
    %91 = vector.load %arg1[%c32, %c0_33] : memref<560x128xf32, #tpu.memory_space<vmem>>, vector<8x24xf32>
    %c32_34 = arith.constant 32 : index
    %c24_35 = arith.constant 24 : index
    %92 = vector.load %arg1[%c32_34, %c24_35] : memref<560x128xf32, #tpu.memory_space<vmem>>, vector<8x1xf32>
    %c127_i32_36 = arith.constant 127 : i32
    %93 = tpu.dynamic_rotate %89 by %c127_i32_36 dim 1 : vector<8x128xf32>, i32 -> vector<8x128xf32>
    %94 = vector.broadcast %45 : vector<1x128xf32> to vector<8x128xf32>
    %95 = arith.mulf %93, %94 : vector<8x128xf32>
    %c126_i32 = arith.constant 126 : i32
    %96 = tpu.dynamic_rotate %89 by %c126_i32 dim 1 : vector<8x128xf32>, i32 -> vector<8x128xf32>
    %c2_i32 = arith.constant 2 : i32
    %97 = vector.broadcast %c2_i32 : i32 to vector<1x128xi32>
    %98 = arith.addi %16, %97 : vector<1x128xi32>
    %c0_i32_37 = arith.constant 0 : i32
    %99 = vector.broadcast %c0_i32_37 : i32 to vector<1x128xi32>
    %100 = arith.cmpi sge, %98, %99 : vector<1x128xi32>
    %c2_i32_38 = arith.constant 2 : i32
    %101 = vector.broadcast %c2_i32_38 : i32 to vector<1x128xi32>
    %102 = arith.addi %16, %101 : vector<1x128xi32>
    %c64_i32_39 = arith.constant 64 : i32
    %103 = vector.broadcast %c64_i32_39 : i32 to vector<1x128xi32>
    %104 = arith.cmpi slt, %102, %103 : vector<1x128xi32>
    %105 = arith.andi %100, %104 : vector<1x128xi1>
    %106 = arith.extui %105 : vector<1x128xi1> to vector<1x128xi32>
    %107 = arith.sitofp %106 : vector<1x128xi32> to vector<1x128xf32>
    %108 = vector.broadcast %107 : vector<1x128xf32> to vector<8x128xf32>
    %109 = arith.mulf %96, %108 : vector<8x128xf32>
    %110 = tpu.concatenate %89, %95, %109 in 0 : vector<8x128xf32>, vector<8x128xf32>, vector<8x128xf32> -> vector<24x128xf32>
    %cst_40 = arith.constant dense<0.000000e+00> : vector<8x128xf32>
    %111 = tpu.matmul %91, %110, %cst_40 {dimension_numbers = #tpu.dot_dimension_numbers<[1], [0], [0], [1], [0, 0, 1, 1], [], []>} : vector<8x24xf32>, vector<24x128xf32>, vector<8x128xf32> -> vector<8x128xf32>
    %112 = vector.broadcast %92 : vector<8x1xf32> to vector<8x128xf32>
    %113 = arith.addf %111, %112 : vector<8x128xf32>
    %cst_41 = arith.constant dense<0.000000e+00> : vector<8x128xf32>
    %114 = tpu.matmul %113, %90, %cst_41 {dimension_numbers = #tpu.dot_dimension_numbers<[1], [0], [0], [1], [0, 0, 1, 1], [], []>} : vector<8x128xf32>, vector<128x128xf32>, vector<8x128xf32> -> vector<8x128xf32>
    %cst_42 = arith.constant 0.000000e+00 : f32
    %115 = vector.broadcast %cst_42 : f32 to vector<8x128xf32>
    %116 = arith.maximumf %114, %115 : vector<8x128xf32>
    %c40 = arith.constant 40 : index
    %c0_43 = arith.constant 0 : index
    %117 = vector.load %arg1[%c40, %c0_43] : memref<560x128xf32, #tpu.memory_space<vmem>>, vector<8x24xf32>
    %c40_44 = arith.constant 40 : index
    %c24_45 = arith.constant 24 : index
    %118 = vector.load %arg1[%c40_44, %c24_45] : memref<560x128xf32, #tpu.memory_space<vmem>>, vector<8x1xf32>
    %c1_i32_46 = arith.constant 1 : i32
    %119 = tpu.dynamic_rotate %116 by %c1_i32_46 dim 1 : vector<8x128xf32>, i32 -> vector<8x128xf32>
    %c-1_i32_47 = arith.constant -1 : i32
    %120 = vector.broadcast %c-1_i32_47 : i32 to vector<1x128xi32>
    %121 = arith.addi %16, %120 : vector<1x128xi32>
    %c0_i32_48 = arith.constant 0 : i32
    %122 = vector.broadcast %c0_i32_48 : i32 to vector<1x128xi32>
    %123 = arith.cmpi sge, %121, %122 : vector<1x128xi32>
    %c-1_i32_49 = arith.constant -1 : i32
    %124 = vector.broadcast %c-1_i32_49 : i32 to vector<1x128xi32>
    %125 = arith.addi %16, %124 : vector<1x128xi32>
    %c32_i32 = arith.constant 32 : i32
    %126 = vector.broadcast %c32_i32 : i32 to vector<1x128xi32>
    %127 = arith.cmpi slt, %125, %126 : vector<1x128xi32>
    %128 = arith.andi %123, %127 : vector<1x128xi1>
    %129 = arith.extui %128 : vector<1x128xi1> to vector<1x128xi32>
    %130 = arith.sitofp %129 : vector<1x128xi32> to vector<1x128xf32>
    %131 = vector.broadcast %130 : vector<1x128xf32> to vector<8x128xf32>
    %132 = arith.mulf %119, %131 : vector<8x128xf32>
    %c127_i32_50 = arith.constant 127 : i32
    %133 = tpu.dynamic_rotate %116 by %c127_i32_50 dim 1 : vector<8x128xf32>, i32 -> vector<8x128xf32>
    %c1_i32_51 = arith.constant 1 : i32
    %134 = vector.broadcast %c1_i32_51 : i32 to vector<1x128xi32>
    %135 = arith.addi %16, %134 : vector<1x128xi32>
    %c0_i32_52 = arith.constant 0 : i32
    %136 = vector.broadcast %c0_i32_52 : i32 to vector<1x128xi32>
    %137 = arith.cmpi sge, %135, %136 : vector<1x128xi32>
    %c1_i32_53 = arith.constant 1 : i32
    %138 = vector.broadcast %c1_i32_53 : i32 to vector<1x128xi32>
    %139 = arith.addi %16, %138 : vector<1x128xi32>
    %c32_i32_54 = arith.constant 32 : i32
    %140 = vector.broadcast %c32_i32_54 : i32 to vector<1x128xi32>
    %141 = arith.cmpi slt, %139, %140 : vector<1x128xi32>
    %142 = arith.andi %137, %141 : vector<1x128xi1>
    %143 = arith.extui %142 : vector<1x128xi1> to vector<1x128xi32>
    %144 = arith.sitofp %143 : vector<1x128xi32> to vector<1x128xf32>
    %145 = vector.broadcast %144 : vector<1x128xf32> to vector<8x128xf32>
    %146 = arith.mulf %133, %145 : vector<8x128xf32>
    %147 = tpu.concatenate %132, %116, %146 in 0 : vector<8x128xf32>, vector<8x128xf32>, vector<8x128xf32> -> vector<24x128xf32>
    %cst_55 = arith.constant dense<0.000000e+00> : vector<8x128xf32>
    %148 = tpu.matmul %117, %147, %cst_55 {dimension_numbers = #tpu.dot_dimension_numbers<[1], [0], [0], [1], [0, 0, 1, 1], [], []>} : vector<8x24xf32>, vector<24x128xf32>, vector<8x128xf32> -> vector<8x128xf32>
    %149 = vector.broadcast %118 : vector<8x1xf32> to vector<8x128xf32>
    %150 = arith.addf %148, %149 : vector<8x128xf32>
    %c127_i32_56 = arith.constant 127 : i32
    %151 = tpu.dynamic_rotate %80 by %c127_i32_56 dim 1 : vector<8x128xf32>, i32 -> vector<8x128xf32>
    %152 = vector.broadcast %45 : vector<1x128xf32> to vector<8x128xf32>
    %153 = arith.mulf %151, %152 : vector<8x128xf32>
    %154 = arith.maximumf %80, %153 : vector<8x128xf32>
    %cst_57 = arith.constant dense<0.000000e+00> : vector<8x128xf32>
    %155 = tpu.matmul %154, %90, %cst_57 {dimension_numbers = #tpu.dot_dimension_numbers<[1], [0], [0], [1], [0, 0, 1, 1], [], []>} : vector<8x128xf32>, vector<128x128xf32>, vector<8x128xf32> -> vector<8x128xf32>
    %156 = arith.addf %150, %155 : vector<8x128xf32>
    %c48 = arith.constant 48 : index
    %c0_58 = arith.constant 0 : index
    %157 = vector.load %arg1[%c48, %c0_58] : memref<560x128xf32, #tpu.memory_space<vmem>>, vector<8x2xf32>
    %158 = vector.extract_strided_slice %157 {offsets = [0, 0], sizes = [8, 1], strides = [1, 1]} : vector<8x2xf32> to vector<8x1xf32>
    %159 = vector.broadcast %158 : vector<8x1xf32> to vector<8x128xf32>
    %160 = arith.mulf %156, %159 : vector<8x128xf32>
    %161 = vector.extract_strided_slice %157 {offsets = [0, 1], sizes = [8, 1], strides = [1, 1]} : vector<8x2xf32> to vector<8x1xf32>
    %162 = vector.broadcast %161 : vector<8x1xf32> to vector<8x128xf32>
    %163 = arith.addf %160, %162 : vector<8x128xf32>
    %cst_59 = arith.constant 0.000000e+00 : f32
    %164 = vector.broadcast %cst_59 : f32 to vector<8x128xf32>
    %165 = arith.maximumf %163, %164 : vector<8x128xf32>
    %c56 = arith.constant 56 : index
    %c0_60 = arith.constant 0 : index
    %166 = vector.load %arg1[%c56, %c0_60] : memref<560x128xf32, #tpu.memory_space<vmem>>, vector<8x24xf32>
    %c56_61 = arith.constant 56 : index
    %c24_62 = arith.constant 24 : index
    %167 = vector.load %arg1[%c56_61, %c24_62] : memref<560x128xf32, #tpu.memory_space<vmem>>, vector<8x1xf32>
    %c1_i32_63 = arith.constant 1 : i32
    %168 = tpu.dynamic_rotate %165 by %c1_i32_63 dim 1 : vector<8x128xf32>, i32 -> vector<8x128xf32>
    %169 = vector.broadcast %130 : vector<1x128xf32> to vector<8x128xf32>
    %170 = arith.mulf %168, %169 : vector<8x128xf32>
    %c127_i32_64 = arith.constant 127 : i32
    %171 = tpu.dynamic_rotate %165 by %c127_i32_64 dim 1 : vector<8x128xf32>, i32 -> vector<8x128xf32>
    %172 = vector.broadcast %144 : vector<1x128xf32> to vector<8x128xf32>
    %173 = arith.mulf %171, %172 : vector<8x128xf32>
    %174 = tpu.concatenate %170, %165, %173 in 0 : vector<8x128xf32>, vector<8x128xf32>, vector<8x128xf32> -> vector<24x128xf32>
    %cst_65 = arith.constant dense<0.000000e+00> : vector<8x128xf32>
    %175 = tpu.matmul %166, %174, %cst_65 {dimension_numbers = #tpu.dot_dimension_numbers<[1], [0], [0], [1], [0, 0, 1, 1], [], []>} : vector<8x24xf32>, vector<24x128xf32>, vector<8x128xf32> -> vector<8x128xf32>
    %176 = vector.broadcast %167 : vector<8x1xf32> to vector<8x128xf32>
    %177 = arith.addf %175, %176 : vector<8x128xf32>
    %cst_66 = arith.constant 0.000000e+00 : f32
    %178 = vector.broadcast %cst_66 : f32 to vector<8x128xf32>
    %179 = arith.maximumf %177, %178 : vector<8x128xf32>
    %c64 = arith.constant 64 : index
    %c0_67 = arith.constant 0 : index
    %180 = vector.load %arg1[%c64, %c0_67] : memref<560x128xf32, #tpu.memory_space<vmem>>, vector<8x24xf32>
    %c64_68 = arith.constant 64 : index
    %c24_69 = arith.constant 24 : index
    %181 = vector.load %arg1[%c64_68, %c24_69] : memref<560x128xf32, #tpu.memory_space<vmem>>, vector<8x1xf32>
    %c1_i32_70 = arith.constant 1 : i32
    %182 = tpu.dynamic_rotate %179 by %c1_i32_70 dim 1 : vector<8x128xf32>, i32 -> vector<8x128xf32>
    %183 = vector.broadcast %130 : vector<1x128xf32> to vector<8x128xf32>
    %184 = arith.mulf %182, %183 : vector<8x128xf32>
    %c127_i32_71 = arith.constant 127 : i32
    %185 = tpu.dynamic_rotate %179 by %c127_i32_71 dim 1 : vector<8x128xf32>, i32 -> vector<8x128xf32>
    %186 = vector.broadcast %144 : vector<1x128xf32> to vector<8x128xf32>
    %187 = arith.mulf %185, %186 : vector<8x128xf32>
    %188 = tpu.concatenate %184, %179, %187 in 0 : vector<8x128xf32>, vector<8x128xf32>, vector<8x128xf32> -> vector<24x128xf32>
    %cst_72 = arith.constant dense<0.000000e+00> : vector<8x128xf32>
    %189 = tpu.matmul %180, %188, %cst_72 {dimension_numbers = #tpu.dot_dimension_numbers<[1], [0], [0], [1], [0, 0, 1, 1], [], []>} : vector<8x24xf32>, vector<24x128xf32>, vector<8x128xf32> -> vector<8x128xf32>
    %190 = vector.broadcast %181 : vector<8x1xf32> to vector<8x128xf32>
    %191 = arith.addf %189, %190 : vector<8x128xf32>
    %192 = arith.addf %191, %156 : vector<8x128xf32>
    %c72 = arith.constant 72 : index
    %c0_73 = arith.constant 0 : index
    %193 = vector.load %arg1[%c72, %c0_73] : memref<560x128xf32, #tpu.memory_space<vmem>>, vector<8x2xf32>
    %194 = vector.extract_strided_slice %193 {offsets = [0, 0], sizes = [8, 1], strides = [1, 1]} : vector<8x2xf32> to vector<8x1xf32>
    %195 = vector.broadcast %194 : vector<8x1xf32> to vector<8x128xf32>
    %196 = arith.mulf %192, %195 : vector<8x128xf32>
    %197 = vector.extract_strided_slice %193 {offsets = [0, 1], sizes = [8, 1], strides = [1, 1]} : vector<8x2xf32> to vector<8x1xf32>
    %198 = vector.broadcast %197 : vector<8x1xf32> to vector<8x128xf32>
    %199 = arith.addf %196, %198 : vector<8x128xf32>
    %cst_74 = arith.constant 0.000000e+00 : f32
    %200 = vector.broadcast %cst_74 : f32 to vector<8x128xf32>
    %201 = arith.maximumf %199, %200 : vector<8x128xf32>
    %c288 = arith.constant 288 : index
    %c0_75 = arith.constant 0 : index
    %202 = vector.load %arg1[%c288, %c0_75] : memref<560x128xf32, #tpu.memory_space<vmem>>, vector<128x128xf32>
    %c80 = arith.constant 80 : index
    %c0_76 = arith.constant 0 : index
    %203 = vector.load %arg1[%c80, %c0_76] : memref<560x128xf32, #tpu.memory_space<vmem>>, vector<8x24xf32>
    %c80_77 = arith.constant 80 : index
    %c24_78 = arith.constant 24 : index
    %204 = vector.load %arg1[%c80_77, %c24_78] : memref<560x128xf32, #tpu.memory_space<vmem>>, vector<8x1xf32>
    %c127_i32_79 = arith.constant 127 : i32
    %205 = tpu.dynamic_rotate %201 by %c127_i32_79 dim 1 : vector<8x128xf32>, i32 -> vector<8x128xf32>
    %206 = vector.broadcast %144 : vector<1x128xf32> to vector<8x128xf32>
    %207 = arith.mulf %205, %206 : vector<8x128xf32>
    %c126_i32_80 = arith.constant 126 : i32
    %208 = tpu.dynamic_rotate %201 by %c126_i32_80 dim 1 : vector<8x128xf32>, i32 -> vector<8x128xf32>
    %c2_i32_81 = arith.constant 2 : i32
    %209 = vector.broadcast %c2_i32_81 : i32 to vector<1x128xi32>
    %210 = arith.addi %16, %209 : vector<1x128xi32>
    %c0_i32_82 = arith.constant 0 : i32
    %211 = vector.broadcast %c0_i32_82 : i32 to vector<1x128xi32>
    %212 = arith.cmpi sge, %210, %211 : vector<1x128xi32>
    %c2_i32_83 = arith.constant 2 : i32
    %213 = vector.broadcast %c2_i32_83 : i32 to vector<1x128xi32>
    %214 = arith.addi %16, %213 : vector<1x128xi32>
    %c32_i32_84 = arith.constant 32 : i32
    %215 = vector.broadcast %c32_i32_84 : i32 to vector<1x128xi32>
    %216 = arith.cmpi slt, %214, %215 : vector<1x128xi32>
    %217 = arith.andi %212, %216 : vector<1x128xi1>
    %218 = arith.extui %217 : vector<1x128xi1> to vector<1x128xi32>
    %219 = arith.sitofp %218 : vector<1x128xi32> to vector<1x128xf32>
    %220 = vector.broadcast %219 : vector<1x128xf32> to vector<8x128xf32>
    %221 = arith.mulf %208, %220 : vector<8x128xf32>
    %222 = tpu.concatenate %201, %207, %221 in 0 : vector<8x128xf32>, vector<8x128xf32>, vector<8x128xf32> -> vector<24x128xf32>
    %cst_85 = arith.constant dense<0.000000e+00> : vector<8x128xf32>
    %223 = tpu.matmul %203, %222, %cst_85 {dimension_numbers = #tpu.dot_dimension_numbers<[1], [0], [0], [1], [0, 0, 1, 1], [], []>} : vector<8x24xf32>, vector<24x128xf32>, vector<8x128xf32> -> vector<8x128xf32>
    %224 = vector.broadcast %204 : vector<8x1xf32> to vector<8x128xf32>
    %225 = arith.addf %223, %224 : vector<8x128xf32>
    %cst_86 = arith.constant dense<0.000000e+00> : vector<8x128xf32>
    %226 = tpu.matmul %225, %202, %cst_86 {dimension_numbers = #tpu.dot_dimension_numbers<[1], [0], [0], [1], [0, 0, 1, 1], [], []>} : vector<8x128xf32>, vector<128x128xf32>, vector<8x128xf32> -> vector<8x128xf32>
    %cst_87 = arith.constant 0.000000e+00 : f32
    %227 = vector.broadcast %cst_87 : f32 to vector<8x128xf32>
    %228 = arith.maximumf %226, %227 : vector<8x128xf32>
    %c88 = arith.constant 88 : index
    %c0_88 = arith.constant 0 : index
    %229 = vector.load %arg1[%c88, %c0_88] : memref<560x128xf32, #tpu.memory_space<vmem>>, vector<8x24xf32>
    %c88_89 = arith.constant 88 : index
    %c24_90 = arith.constant 24 : index
    %230 = vector.load %arg1[%c88_89, %c24_90] : memref<560x128xf32, #tpu.memory_space<vmem>>, vector<8x1xf32>
    %c1_i32_91 = arith.constant 1 : i32
    %231 = tpu.dynamic_rotate %228 by %c1_i32_91 dim 1 : vector<8x128xf32>, i32 -> vector<8x128xf32>
    %c-1_i32_92 = arith.constant -1 : i32
    %232 = vector.broadcast %c-1_i32_92 : i32 to vector<1x128xi32>
    %233 = arith.addi %16, %232 : vector<1x128xi32>
    %c0_i32_93 = arith.constant 0 : i32
    %234 = vector.broadcast %c0_i32_93 : i32 to vector<1x128xi32>
    %235 = arith.cmpi sge, %233, %234 : vector<1x128xi32>
    %c-1_i32_94 = arith.constant -1 : i32
    %236 = vector.broadcast %c-1_i32_94 : i32 to vector<1x128xi32>
    %237 = arith.addi %16, %236 : vector<1x128xi32>
    %c16_i32 = arith.constant 16 : i32
    %238 = vector.broadcast %c16_i32 : i32 to vector<1x128xi32>
    %239 = arith.cmpi slt, %237, %238 : vector<1x128xi32>
    %240 = arith.andi %235, %239 : vector<1x128xi1>
    %241 = arith.extui %240 : vector<1x128xi1> to vector<1x128xi32>
    %242 = arith.sitofp %241 : vector<1x128xi32> to vector<1x128xf32>
    %243 = vector.broadcast %242 : vector<1x128xf32> to vector<8x128xf32>
    %244 = arith.mulf %231, %243 : vector<8x128xf32>
    %c127_i32_95 = arith.constant 127 : i32
    %245 = tpu.dynamic_rotate %228 by %c127_i32_95 dim 1 : vector<8x128xf32>, i32 -> vector<8x128xf32>
    %c1_i32_96 = arith.constant 1 : i32
    %246 = vector.broadcast %c1_i32_96 : i32 to vector<1x128xi32>
    %247 = arith.addi %16, %246 : vector<1x128xi32>
    %c0_i32_97 = arith.constant 0 : i32
    %248 = vector.broadcast %c0_i32_97 : i32 to vector<1x128xi32>
    %249 = arith.cmpi sge, %247, %248 : vector<1x128xi32>
    %c1_i32_98 = arith.constant 1 : i32
    %250 = vector.broadcast %c1_i32_98 : i32 to vector<1x128xi32>
    %251 = arith.addi %16, %250 : vector<1x128xi32>
    %c16_i32_99 = arith.constant 16 : i32
    %252 = vector.broadcast %c16_i32_99 : i32 to vector<1x128xi32>
    %253 = arith.cmpi slt, %251, %252 : vector<1x128xi32>
    %254 = arith.andi %249, %253 : vector<1x128xi1>
    %255 = arith.extui %254 : vector<1x128xi1> to vector<1x128xi32>
    %256 = arith.sitofp %255 : vector<1x128xi32> to vector<1x128xf32>
    %257 = vector.broadcast %256 : vector<1x128xf32> to vector<8x128xf32>
    %258 = arith.mulf %245, %257 : vector<8x128xf32>
    %259 = tpu.concatenate %244, %228, %258 in 0 : vector<8x128xf32>, vector<8x128xf32>, vector<8x128xf32> -> vector<24x128xf32>
    %cst_100 = arith.constant dense<0.000000e+00> : vector<8x128xf32>
    %260 = tpu.matmul %229, %259, %cst_100 {dimension_numbers = #tpu.dot_dimension_numbers<[1], [0], [0], [1], [0, 0, 1, 1], [], []>} : vector<8x24xf32>, vector<24x128xf32>, vector<8x128xf32> -> vector<8x128xf32>
    %261 = vector.broadcast %230 : vector<8x1xf32> to vector<8x128xf32>
    %262 = arith.addf %260, %261 : vector<8x128xf32>
    %c127_i32_101 = arith.constant 127 : i32
    %263 = tpu.dynamic_rotate %192 by %c127_i32_101 dim 1 : vector<8x128xf32>, i32 -> vector<8x128xf32>
    %264 = vector.broadcast %144 : vector<1x128xf32> to vector<8x128xf32>
    %265 = arith.mulf %263, %264 : vector<8x128xf32>
    %266 = arith.maximumf %192, %265 : vector<8x128xf32>
    %cst_102 = arith.constant dense<0.000000e+00> : vector<8x128xf32>
    %267 = tpu.matmul %266, %202, %cst_102 {dimension_numbers = #tpu.dot_dimension_numbers<[1], [0], [0], [1], [0, 0, 1, 1], [], []>} : vector<8x128xf32>, vector<128x128xf32>, vector<8x128xf32> -> vector<8x128xf32>
    %268 = arith.addf %262, %267 : vector<8x128xf32>
    %c96 = arith.constant 96 : index
    %c0_103 = arith.constant 0 : index
    %269 = vector.load %arg1[%c96, %c0_103] : memref<560x128xf32, #tpu.memory_space<vmem>>, vector<8x2xf32>
    %270 = vector.extract_strided_slice %269 {offsets = [0, 0], sizes = [8, 1], strides = [1, 1]} : vector<8x2xf32> to vector<8x1xf32>
    %271 = vector.broadcast %270 : vector<8x1xf32> to vector<8x128xf32>
    %272 = arith.mulf %268, %271 : vector<8x128xf32>
    %273 = vector.extract_strided_slice %269 {offsets = [0, 1], sizes = [8, 1], strides = [1, 1]} : vector<8x2xf32> to vector<8x1xf32>
    %274 = vector.broadcast %273 : vector<8x1xf32> to vector<8x128xf32>
    %275 = arith.addf %272, %274 : vector<8x128xf32>
    %cst_104 = arith.constant 0.000000e+00 : f32
    %276 = vector.broadcast %cst_104 : f32 to vector<8x128xf32>
    %277 = arith.maximumf %275, %276 : vector<8x128xf32>
    %c104 = arith.constant 104 : index
    %c0_105 = arith.constant 0 : index
    %278 = vector.load %arg1[%c104, %c0_105] : memref<560x128xf32, #tpu.memory_space<vmem>>, vector<16x24xf32>
    %c104_106 = arith.constant 104 : index
    %c24_107 = arith.constant 24 : index
    %279 = vector.load %arg1[%c104_106, %c24_107] : memref<560x128xf32, #tpu.memory_space<vmem>>, vector<16x1xf32>
    %c1_i32_108 = arith.constant 1 : i32
    %280 = tpu.dynamic_rotate %277 by %c1_i32_108 dim 1 : vector<8x128xf32>, i32 -> vector<8x128xf32>
    %281 = vector.broadcast %242 : vector<1x128xf32> to vector<8x128xf32>
    %282 = arith.mulf %280, %281 : vector<8x128xf32>
    %c127_i32_109 = arith.constant 127 : i32
    %283 = tpu.dynamic_rotate %277 by %c127_i32_109 dim 1 : vector<8x128xf32>, i32 -> vector<8x128xf32>
    %284 = vector.broadcast %256 : vector<1x128xf32> to vector<8x128xf32>
    %285 = arith.mulf %283, %284 : vector<8x128xf32>
    %286 = tpu.concatenate %282, %277, %285 in 0 : vector<8x128xf32>, vector<8x128xf32>, vector<8x128xf32> -> vector<24x128xf32>
    %cst_110 = arith.constant dense<0.000000e+00> : vector<16x128xf32>
    %287 = tpu.matmul %278, %286, %cst_110 {dimension_numbers = #tpu.dot_dimension_numbers<[1], [0], [0], [1], [0, 0, 1, 1], [], []>} : vector<16x24xf32>, vector<24x128xf32>, vector<16x128xf32> -> vector<16x128xf32>
    %288 = vector.broadcast %279 : vector<16x1xf32> to vector<16x128xf32>
    %289 = arith.addf %287, %288 : vector<16x128xf32>
    %cst_111 = arith.constant 0.000000e+00 : f32
    %290 = vector.broadcast %cst_111 : f32 to vector<16x128xf32>
    %291 = arith.maximumf %289, %290 : vector<16x128xf32>
    %c120 = arith.constant 120 : index
    %c0_112 = arith.constant 0 : index
    %292 = vector.load %arg1[%c120, %c0_112] : memref<560x128xf32, #tpu.memory_space<vmem>>, vector<16x48xf32>
    %c120_113 = arith.constant 120 : index
    %c48_114 = arith.constant 48 : index
    %293 = vector.load %arg1[%c120_113, %c48_114] : memref<560x128xf32, #tpu.memory_space<vmem>>, vector<16x1xf32>
    %c1_i32_115 = arith.constant 1 : i32
    %294 = tpu.dynamic_rotate %291 by %c1_i32_115 dim 1 : vector<16x128xf32>, i32 -> vector<16x128xf32>
    %295 = vector.broadcast %242 : vector<1x128xf32> to vector<16x128xf32>
    %296 = arith.mulf %294, %295 : vector<16x128xf32>
    %c127_i32_116 = arith.constant 127 : i32
    %297 = tpu.dynamic_rotate %291 by %c127_i32_116 dim 1 : vector<16x128xf32>, i32 -> vector<16x128xf32>
    %298 = vector.broadcast %256 : vector<1x128xf32> to vector<16x128xf32>
    %299 = arith.mulf %297, %298 : vector<16x128xf32>
    %300 = tpu.concatenate %296, %291, %299 in 0 : vector<16x128xf32>, vector<16x128xf32>, vector<16x128xf32> -> vector<48x128xf32>
    %cst_117 = arith.constant dense<0.000000e+00> : vector<16x128xf32>
    %301 = tpu.matmul %292, %300, %cst_117 {dimension_numbers = #tpu.dot_dimension_numbers<[1], [0], [0], [1], [0, 0, 1, 1], [], []>} : vector<16x48xf32>, vector<48x128xf32>, vector<16x128xf32> -> vector<16x128xf32>
    %302 = vector.broadcast %293 : vector<16x1xf32> to vector<16x128xf32>
    %303 = arith.addf %301, %302 : vector<16x128xf32>
    %c544 = arith.constant 544 : index
    %c0_118 = arith.constant 0 : index
    %304 = vector.load %arg1[%c544, %c0_118] : memref<560x128xf32, #tpu.memory_space<vmem>>, vector<16x8xf32>
    %cst_119 = arith.constant dense<0.000000e+00> : vector<16x128xf32>
    %305 = tpu.matmul %304, %268, %cst_119 {dimension_numbers = #tpu.dot_dimension_numbers<[1], [0], [0], [1], [0, 0, 1, 1], [], []>} : vector<16x8xf32>, vector<8x128xf32>, vector<16x128xf32> -> vector<16x128xf32>
    %306 = arith.addf %303, %305 : vector<16x128xf32>
    %c136 = arith.constant 136 : index
    %c0_120 = arith.constant 0 : index
    %307 = vector.load %arg1[%c136, %c0_120] : memref<560x128xf32, #tpu.memory_space<vmem>>, vector<16x2xf32>
    %308 = vector.extract_strided_slice %307 {offsets = [0, 0], sizes = [16, 1], strides = [1, 1]} : vector<16x2xf32> to vector<16x1xf32>
    %309 = vector.broadcast %308 : vector<16x1xf32> to vector<16x128xf32>
    %310 = arith.mulf %306, %309 : vector<16x128xf32>
    %311 = vector.extract_strided_slice %307 {offsets = [0, 1], sizes = [16, 1], strides = [1, 1]} : vector<16x2xf32> to vector<16x1xf32>
    %312 = vector.broadcast %311 : vector<16x1xf32> to vector<16x128xf32>
    %313 = arith.addf %310, %312 : vector<16x128xf32>
    %cst_121 = arith.constant 0.000000e+00 : f32
    %314 = vector.broadcast %cst_121 : f32 to vector<16x128xf32>
    %315 = arith.maximumf %313, %314 : vector<16x128xf32>
    %c416 = arith.constant 416 : index
    %c0_122 = arith.constant 0 : index
    %316 = vector.load %arg1[%c416, %c0_122] : memref<560x128xf32, #tpu.memory_space<vmem>>, vector<128x2xf32>
    %cst_123 = arith.constant dense<0.000000e+00> : vector<16x2xf32>
    %317 = tpu.matmul %315, %316, %cst_123 {dimension_numbers = #tpu.dot_dimension_numbers<[1], [0], [0], [1], [0, 0, 1, 1], [], []>} : vector<16x128xf32>, vector<128x2xf32>, vector<16x2xf32> -> vector<16x2xf32>
    %c152 = arith.constant 152 : index
    %c0_124 = arith.constant 0 : index
    %318 = vector.load %arg1[%c152, %c0_124] : memref<560x128xf32, #tpu.memory_space<vmem>>, vector<5x17xf32>
    %319 = vector.extract_strided_slice %318 {offsets = [0, 0], sizes = [5, 16], strides = [1, 1]} : vector<5x17xf32> to vector<5x16xf32>
    %cst_125 = arith.constant dense<0.000000e+00> : vector<5x2xf32>
    %320 = tpu.matmul %319, %317, %cst_125 {dimension_numbers = #tpu.dot_dimension_numbers<[1], [0], [0], [1], [0, 0, 1, 1], [], []>} : vector<5x16xf32>, vector<16x2xf32>, vector<5x2xf32> -> vector<5x2xf32>
    %321 = vector.extract_strided_slice %318 {offsets = [0, 16], sizes = [5, 1], strides = [1, 1]} : vector<5x17xf32> to vector<5x1xf32>
    %322 = vector.broadcast %321 : vector<5x1xf32> to vector<5x2xf32>
    %323 = arith.addf %320, %322 : vector<5x2xf32>
    %c0_126 = arith.constant 0 : index
    %c0_127 = arith.constant 0 : index
    %324 = vector.load %arg2[%c0_126, %c0_127] : memref<5x2xf32, #tpu.memory_space<vmem>>, vector<5x2xf32>
    tpu.vector_store %arg2[%c0_126, %c0_127], %323 {strides = array<i32>} : memref<5x2xf32, #tpu.memory_space<vmem>>, vector<5x2xf32>,
    return
  }
}

</mosaic_0001>

<llo_original>
// kernel: adsb_forward_fused.1
$region0: #{adsb_forward_fused.1}
  #allocation0 [shape = 'u32[]', space=smem, size = 0x4, offset = 0x4, fixed_abs, tag = 'smem constant byte address 0x4 - core index']
  #allocation1 [shape = 'u32[72,128]{1,0:T(1,128)}', space=vmem, size = 0x9000, scoped, tag = 'internal scratch']
  %s0 = inlined_call_operand.vmem [shape: f32[8,128], index: 0, kind: input, shape index: {}]
  %s1 = inlined_call_operand.vmem [shape: f32[560,128], index: 1, kind: input, shape index: {}]
  %s2 = inlined_call_operand.vmem [shape: f32[5,2], index: 2, kind: output, shape index: {}]
  %s3 = sld [smem:[#allocation0]]
  $region18: #{adsb_forward_fused.1} parent=0
    _
  %s5 = ssub.s32 1, %s3
  %s6 = scalar_select 0, %s5, %s3
  // Predicated region
  $region2: #{adsb_forward_fused.1} parent=0 // pred_check
    _
  $region3: #{adsb_forward_fused.1} parent=0 // pred_check_branch
    %8 = sbr.rel (0) target = $region5
  $region4: #{adsb_forward_fused.1} parent=0 // pred_region
    _
  $region5: #{adsb_forward_fused.1} parent=0 // pred_fallthru
    _
  // Predicated region
  $region6: #{adsb_forward_fused.1} parent=0 // pred_check
    _
  $region7: #{adsb_forward_fused.1} parent=0 // pred_check_branch
    %10 = sbr.rel (0) target = $region9
  $region8: #{adsb_forward_fused.1} parent=0 // pred_region
    _
  $region9: #{adsb_forward_fused.1} parent=0 // pred_fallthru
    _
  %v11 = vlaneseq
  %v12 = vand.u32 %v11, 127
  %vm13 = vcmp.lt.s32.totalorder %v12, 0
  %v14 = vsub.s32 0, %v12
  %v15 = vsel %vm13, %v14, %v12
  %v16 = vshrl.u32 %v15, 6
  %v17 = vand.u32 %v15, 63
  %v18 = vsub.s32 0, %v17
  %v19 = vsel %vm13, %v18, %v17
  %vm20 = vcmp.ne.s32.totalorder %v19, 0
  %vm21 = vcmp.lt.s32.totalorder %v19, 0
  %vm22 = vmand %vm21, %vm20
  %v23 = vadd.s32 %v19, 64
  %v24 = vsel %vm22, %v23, %v19
  %v25 = vld [vmem:[%s0] sm:$0xff]
  %v26 = vld [vmem:[%s1] sm:$0xff]
  %27 = vrot.lane.b32.xlu0 %v25, 1
  %v28 = vpop.permute.xlu0 %27
  %v29 = vadd.s32 %v24, 4294967295
  %vm30 = vcmp.ge.s32.totalorder %v29, 0
  %vm31 = vcmp.lt.s32.totalorder %v29, 64
  %vm32 = vmand %vm30, %vm31
  %v33 = vsel %vm32, 1, 0
  %v34 = vcvt.s32.f32 %v33
  %v35 = vmul.f32 %v28, %v34
  %36 = vrot.lane.b32.xlu0 %v25, 127
  %v37 = vpop.permute.xlu0 %36
  %v38 = vadd.s32 %v24, 1
  %vm39 = vcmp.ge.s32.totalorder %v38, 0
  %vm40 = vcmp.lt.s32.totalorder %v38, 64
  %vm41 = vmand %vm39, %vm40
  %v42 = vsel %vm41, 1, 0
  %v43 = vcvt.s32.f32 %v42
  %v44 = vmul.f32 %v37, %v43
  %46 = vset.pattern.permute.xlu0 24
  %47 = vperm.xlu0 %46, %v26
  %v48 = vpop.permute.xlu0 %47
  %vm50 = vcmask 195584
  %v51 = vsel %vm50, %v26, 0
  %53 = vmatpush.msra.mxu0 0.0
  %54 = vmatpush.msra.mxu0 0.0
  %55 = vmatpush.msra.mxu0 0.0
  %56 = vmatpush.msra.mxu0 0.0
  %57 = vmatpush.msra.mxu0 0.0
  %58 = vmatpush.msra.mxu0 0.0
  %59 = vmatpush.msra.mxu0 0.0
  %60 = vmatpush.msra.mxu0 0.0
  %61 = vmatpush.msra.mxu0 0.0
  %62 = vmatpush.msra.mxu0 0.0
  %63 = vmatpush.msra.mxu0 0.0
  %64 = vmatpush.msra.mxu0 0.0
  %65 = vmatpush.msra.mxu0 0.0
  %66 = vmatpush.msra.mxu0 %v44
  %67 = vmatpush.msra.mxu0 %v25
  %68 = vmatpush.msra.mxu0 %v35
  %69 = vmatmul.f32.gmra.mxu0 %v51
  %v70 = vpop.f32.mrf.mxu0
  %v71 = vadd.f32 %v48, %v70
  %72 = vdwg.mxu0
  %v73 = vmax.f32 %v71, 0.0
  %v74 = vld [vmem:[%s1 + $0x8] sm:$0xff]
  %75 = vrot.lane.b32.xlu0 %v73, 1
  %v76 = vpop.permute.xlu0 %75
  %v77 = vmul.f32 %v76, %v34
  %78 = vrot.lane.b32.xlu0 %v73, 127
  %v79 = vpop.permute.xlu0 %78
  %v80 = vmul.f32 %v79, %v43
  %82 = vset.pattern.permute.xlu0 24
  %83 = vperm.xlu0 %82, %v74
  %v84 = vpop.permute.xlu0 %83
  %v86 = vsel %vm50, %v74, 0
  %88 = vmatpush.msra.mxu0 0.0
  %89 = vmatpush.msra.mxu0 0.0
  %90 = vmatpush.msra.mxu0 0.0
  %91 = vmatpush.msra.mxu0 0.0
  %92 = vmatpush.msra.mxu0 0.0
  %93 = vmatpush.msra.mxu0 0.0
  %94 = vmatpush.msra.mxu0 0.0
  %95 = vmatpush.msra.mxu0 0.0
  %96 = vmatpush.msra.mxu0 0.0
  %97 = vmatpush.msra.mxu0 0.0
  %98 = vmatpush.msra.mxu0 0.0
  %99 = vmatpush.msra.mxu0 0.0
  %100 = vmatpush.msra.mxu0 0.0
  %101 = vmatpush.msra.mxu0 %v80
  %102 = vmatpush.msra.mxu0 %v73
  %103 = vmatpush.msra.mxu0 %v77
  %104 = vmatmul.f32.gmra.mxu0 %v86
  %v105 = vpop.f32.mrf.mxu0
  %v106 = vadd.f32 %v84, %v105
  %107 = vdwg.mxu0
  %v108 = vmax.f32 %v106, 0.0
  %v109 = vld [vmem:[%s1 + $0x10] sm:$0xff]
  %110 = vrot.lane.b32.xlu0 %v108, 1
  %v111 = vpop.permute.xlu0 %110
  %v112 = vmul.f32 %v111, %v34
  %113 = vrot.lane.b32.xlu0 %v108, 127
  %v114 = vpop.permute.xlu0 %113
  %v115 = vmul.f32 %v114, %v43
  %117 = vset.pattern.permute.xlu0 24
  %118 = vperm.xlu0 %117, %v109
  %v119 = vpop.permute.xlu0 %118
  %v121 = vsel %vm50, %v109, 0
  %123 = vmatpush.msra.mxu0 0.0
  %124 = vmatpush.msra.mxu0 0.0
  %125 = vmatpush.msra.mxu0 0.0
  %126 = vmatpush.msra.mxu0 0.0
  %127 = vmatpush.msra.mxu0 0.0
  %128 = vmatpush.msra.mxu0 0.0
  %129 = vmatpush.msra.mxu0 0.0
  %130 = vmatpush.msra.mxu0 0.0
  %131 = vmatpush.msra.mxu0 0.0
  %132 = vmatpush.msra.mxu0 0.0
  %133 = vmatpush.msra.mxu0 0.0
  %134 = vmatpush.msra.mxu0 0.0
  %135 = vmatpush.msra.mxu0 0.0
  %136 = vmatpush.msra.mxu0 %v115
  %137 = vmatpush.msra.mxu0 %v108
  %138 = vmatpush.msra.mxu0 %v112
  %139 = vmatmul.f32.gmra.mxu0 %v121
  %v140 = vpop.f32.mrf.mxu0
  %v141 = vadd.f32 %v119, %v140
  %142 = vdwg.mxu0
  %v143 = vadd.f32 %v141, %v73
  %v144 = vld [vmem:[%s1 + $0x18] sm:$0xff]
  %146 = vset.pattern.permute.xlu0 0
  %147 = vperm.xlu0 %146, %v144
  %v148 = vpop.permute.xlu0 %147
  %v150 = vmul.f32 %v143, %v148
  %151 = vset.pattern.permute.xlu0 1
  %152 = vperm.xlu0 %151, %v144
  %v153 = vpop.permute.xlu0 %152
  %v155 = vadd.f32 %v150, %v153
  %v156 = vmax.f32 %v155, 0.0
  %v157 = vld [vmem:[%s1 + $0xa0] sm:$0xff]
  %v158 = vld [vmem:[%s1 + $0xa8] sm:$0xff]
  %v159 = vld [vmem:[%s1 + $0xb0] sm:$0xff]
  %v160 = vld [vmem:[%s1 + $0xb8] sm:$0xff]
  %v161 = vld [vmem:[%s1 + $0xc0] sm:$0xff]
  %v162 = vld [vmem:[%s1 + $0xc8] sm:$0xff]
  %v163 = vld [vmem:[%s1 + $0xd0] sm:$0xff]
  %v164 = vld [vmem:[%s1 + $0xd8] sm:$0xff]
  %v165 = vld [vmem:[%s1 + $0xe0] sm:$0xff]
  %v166 = vld [vmem:[%s1 + $0xe8] sm:$0xff]
  %v167 = vld [vmem:[%s1 + $0xf0] sm:$0xff]
  %v168 = vld [vmem:[%s1 + $0xf8] sm:$0xff]
  %v169 = vld [vmem:[%s1 + $0x100] sm:$0xff]
  %v170 = vld [vmem:[%s1 + $0x108] sm:$0xff]
  %v171 = vld [vmem:[%s1 + $0x110] sm:$0xff]
  %v172 = vld [vmem:[%s1 + $0x118] sm:$0xff]
  %v173 = vld [vmem:[%s1 + $0x20] sm:$0xff]
  %174 = vrot.lane.b32.xlu0 %v156, 127
  %v175 = vpop.permute.xlu0 %174
  %v176 = vmul.f32 %v175, %v43
  %177 = vrot.lane.b32.xlu0 %v156, 126
  %v178 = vpop.permute.xlu0 %177
  %v179 = vadd.s32 %v24, 2
  %vm180 = vcmp.ge.s32.totalorder %v179, 0
  %vm181 = vcmp.lt.s32.totalorder %v179, 64
  %vm182 = vmand %vm180, %vm181
  %v183 = vsel %vm182, 1, 0
  %v184 = vcvt.s32.f32 %v183
  %v185 = vmul.f32 %v178, %v184
  %187 = vset.pattern.permute.xlu0 24
  %188 = vperm.xlu0 %187, %v173
  %v189 = vpop.permute.xlu0 %188
  %v191 = vsel %vm50, %v173, 0
  %193 = vmatpush.msra.mxu0 0.0
  %194 = vmatpush.msra.mxu0 0.0
  %195 = vmatpush.msra.mxu0 0.0
  %196 = vmatpush.msra.mxu0 0.0
  %197 = vmatpush.msra.mxu0 0.0
  %198 = vmatpush.msra.mxu0 0.0
  %199 = vmatpush.msra.mxu0 0.0
  %200 = vmatpush.msra.mxu0 0.0
  %201 = vmatpush.msra.mxu0 0.0
  %202 = vmatpush.msra.mxu0 0.0
  %203 = vmatpush.msra.mxu0 0.0
  %204 = vmatpush.msra.mxu0 0.0
  %205 = vmatpush.msra.mxu0 0.0
  %206 = vmatpush.msra.mxu0 %v185
  %207 = vmatpush.msra.mxu0 %v176
  %208 = vmatpush.msra.mxu0 %v156
  %209 = vmatmul.f32.gmra.mxu0 %v191
  %v210 = vpop.f32.mrf.mxu0
  %v211 = vadd.f32 %v189, %v210
  %212 = vdwg.mxu0
  %213 = vmatpush.msra.mxu0 %v172
  %214 = vmatpush.msra.mxu0 %v171
  %215 = vmatpush.msra.mxu0 %v170
  %216 = vmatpush.msra.mxu0 %v169
  %217 = vmatpush.msra.mxu0 %v168
  %218 = vmatpush.msra.mxu0 %v167
  %219 = vmatpush.msra.mxu0 %v166
  %220 = vmatpush.msra.mxu0 %v165
  %221 = vmatpush.msra.mxu0 %v164
  %222 = vmatpush.msra.mxu0 %v163
  %223 = vmatpush.msra.mxu0 %v162
  %224 = vmatpush.msra.mxu0 %v161
  %225 = vmatpush.msra.mxu0 %v160
  %226 = vmatpush.msra.mxu0 %v159
  %227 = vmatpush.msra.mxu0 %v158
  %228 = vmatpush.msra.mxu0 %v157
  %229 = vmatmul.f32.gmra.mxu0 %v211
  %v230 = vpop.f32.mrf.mxu0
  %v231 = vadd.f32 0.0, %v230
  %232 = vdwg.mxu0
  %v233 = vmax.f32 %v231, 0.0
  %v234 = vld [vmem:[%s1 + $0x28] sm:$0xff]
  %235 = vrot.lane.b32.xlu0 %v233, 1
  %v236 = vpop.permute.xlu0 %235
  %vm237 = vcmp.lt.s32.totalorder %v29, 32
  %vm238 = vmand %vm30, %vm237
  %v239 = vsel %vm238, 1, 0
  %v240 = vcvt.s32.f32 %v239
  %v241 = vmul.f32 %v236, %v240
  %242 = vrot.lane.b32.xlu0 %v233, 127
  %v243 = vpop.permute.xlu0 %242
  %vm244 = vcmp.lt.s32.totalorder %v38, 32
  %vm245 = vmand %vm39, %vm244
  %v246 = vsel %vm245, 1, 0
  %v247 = vcvt.s32.f32 %v246
  %v248 = vmul.f32 %v243, %v247
  %250 = vset.pattern.permute.xlu0 24
  %251 = vperm.xlu0 %250, %v234
  %v252 = vpop.permute.xlu0 %251
  %v254 = vsel %vm50, %v234, 0
  %256 = vmatpush.msra.mxu0 0.0
  %257 = vmatpush.msra.mxu0 0.0
  %258 = vmatpush.msra.mxu0 0.0
  %259 = vmatpush.msra.mxu0 0.0
  %260 = vmatpush.msra.mxu0 0.0
  %261 = vmatpush.msra.mxu0 0.0
  %262 = vmatpush.msra.mxu0 0.0
  %263 = vmatpush.msra.mxu0 0.0
  %264 = vmatpush.msra.mxu0 0.0
  %265 = vmatpush.msra.mxu0 0.0
  %266 = vmatpush.msra.mxu0 0.0
  %267 = vmatpush.msra.mxu0 0.0
  %268 = vmatpush.msra.mxu0 0.0
  %269 = vmatpush.msra.mxu0 %v248
  %270 = vmatpush.msra.mxu0 %v233
  %271 = vmatpush.msra.mxu0 %v241
  %272 = vmatmul.f32.gmra.mxu0 %v254
  %v273 = vpop.f32.mrf.mxu0
  %v274 = vadd.f32 %v252, %v273
  %275 = vdwg.mxu0
  %276 = vrot.lane.b32.xlu0 %v143, 127
  %v277 = vpop.permute.xlu0 %276
  %v278 = vmul.f32 %v277, %v43
  %v279 = vmax.f32 %v143, %v278
  %280 = vmatpush.msra.mxu0 %v172
  %281 = vmatpush.msra.mxu0 %v171
  %282 = vmatpush.msra.mxu0 %v170
  %283 = vmatpush.msra.mxu0 %v169
  %284 = vmatpush.msra.mxu0 %v168
  %285 = vmatpush.msra.mxu0 %v167
  %286 = vmatpush.msra.mxu0 %v166
  %287 = vmatpush.msra.mxu0 %v165
  %288 = vmatpush.msra.mxu0 %v164
  %289 = vmatpush.msra.mxu0 %v163
  %290 = vmatpush.msra.mxu0 %v162
  %291 = vmatpush.msra.mxu0 %v161
  %292 = vmatpush.msra.mxu0 %v160
  %293 = vmatpush.msra.mxu0 %v159
  %294 = vmatpush.msra.mxu0 %v158
  %295 = vmatpush.msra.mxu0 %v157
  %296 = vmatmul.f32.gmra.mxu0 %v279
  %v297 = vpop.f32.mrf.mxu0
  %v298 = vadd.f32 0.0, %v297
  %299 = vdwg.mxu0
  %v300 = vadd.f32 %v274, %v298
  %v301 = vld [vmem:[%s1 + $0x30] sm:$0xff]
  %303 = vset.pattern.permute.xlu0 0
  %304 = vperm.xlu0 %303, %v301
  %v305 = vpop.permute.xlu0 %304
  %v307 = vmul.f32 %v300, %v305
  %308 = vset.pattern.permute.xlu0 1
  %309 = vperm.xlu0 %308, %v301
  %v310 = vpop.permute.xlu0 %309
  %v312 = vadd.f32 %v307, %v310
  %v313 = vmax.f32 %v312, 0.0
  %v314 = vld [vmem:[%s1 + $0x38] sm:$0xff]
  %315 = vrot.lane.b32.xlu0 %v313, 1
  %v316 = vpop.permute.xlu0 %315
  %v317 = vmul.f32 %v316, %v240
  %318 = vrot.lane.b32.xlu0 %v313, 127
  %v319 = vpop.permute.xlu0 %318
  %v320 = vmul.f32 %v319, %v247
  %322 = vset.pattern.permute.xlu0 24
  %323 = vperm.xlu0 %322, %v314
  %v324 = vpop.permute.xlu0 %323
  %v326 = vsel %vm50, %v314, 0
  %328 = vmatpush.msra.mxu0 0.0
  %329 = vmatpush.msra.mxu0 0.0
  %330 = vmatpush.msra.mxu0 0.0
  %331 = vmatpush.msra.mxu0 0.0
  %332 = vmatpush.msra.mxu0 0.0
  %333 = vmatpush.msra.mxu0 0.0
  %334 = vmatpush.msra.mxu0 0.0
  %335 = vmatpush.msra.mxu0 0.0
  %336 = vmatpush.msra.mxu0 0.0
  %337 = vmatpush.msra.mxu0 0.0
  %338 = vmatpush.msra.mxu0 0.0
  %339 = vmatpush.msra.mxu0 0.0
  %340 = vmatpush.msra.mxu0 0.0
  %341 = vmatpush.msra.mxu0 %v320
  %342 = vmatpush.msra.mxu0 %v313
  %343 = vmatpush.msra.mxu0 %v317
  %344 = vmatmul.f32.gmra.mxu0 %v326
  %v345 = vpop.f32.mrf.mxu0
  %v346 = vadd.f32 %v324, %v345
  %347 = vdwg.mxu0
  %v348 = vmax.f32 %v346, 0.0
  %v349 = vld [vmem:[%s1 + $0x40] sm:$0xff]
  %350 = vrot.lane.b32.xlu0 %v348, 1
  %v351 = vpop.permute.xlu0 %350
  %v352 = vmul.f32 %v351, %v240
  %353 = vrot.lane.b32.xlu0 %v348, 127
  %v354 = vpop.permute.xlu0 %353
  %v355 = vmul.f32 %v354, %v247
  %357 = vset.pattern.permute.xlu0 24
  %358 = vperm.xlu0 %357, %v349
  %v359 = vpop.permute.xlu0 %358
  %v361 = vsel %vm50, %v349, 0
  %363 = vmatpush.msra.mxu0 0.0
  %364 = vmatpush.msra.mxu0 0.0
  %365 = vmatpush.msra.mxu0 0.0
  %366 = vmatpush.msra.mxu0 0.0
  %367 = vmatpush.msra.mxu0 0.0
  %368 = vmatpush.msra.mxu0 0.0
  %369 = vmatpush.msra.mxu0 0.0
  %370 = vmatpush.msra.mxu0 0.0
  %371 = vmatpush.msra.mxu0 0.0
  %372 = vmatpush.msra.mxu0 0.0
  %373 = vmatpush.msra.mxu0 0.0
  %374 = vmatpush.msra.mxu0 0.0
  %375 = vmatpush.msra.mxu0 0.0
  %376 = vmatpush.msra.mxu0 %v355
  %377 = vmatpush.msra.mxu0 %v348
  %378 = vmatpush.msra.mxu0 %v352
  %379 = vmatmul.f32.gmra.mxu0 %v361
  %v380 = vpop.f32.mrf.mxu0
  %v381 = vadd.f32 %v359, %v380
  %382 = vdwg.mxu0
  %v383 = vadd.f32 %v381, %v300
  %v384 = vld [vmem:[%s1 + $0x48] sm:$0xff]
  %386 = vset.pattern.permute.xlu0 0
  %387 = vperm.xlu0 %386, %v384
  %v388 = vpop.permute.xlu0 %387
  %v390 = vmul.f32 %v383, %v388
  %391 = vset.pattern.permute.xlu0 1
  %392 = vperm.xlu0 %391, %v384
  %v393 = vpop.permute.xlu0 %392
  %v395 = vadd.f32 %v390, %v393
  %v396 = vmax.f32 %v395, 0.0
  %v397 = vld [vmem:[%s1 + $0x120] sm:$0xff]
  %v398 = vld [vmem:[%s1 + $0x128] sm:$0xff]
  %v399 = vld [vmem:[%s1 + $0x130] sm:$0xff]
  %v400 = vld [vmem:[%s1 + $0x138] sm:$0xff]
  %v401 = vld [vmem:[%s1 + $0x140] sm:$0xff]
  %v402 = vld [vmem:[%s1 + $0x148] sm:$0xff]
  %v403 = vld [vmem:[%s1 + $0x150] sm:$0xff]
  %v404 = vld [vmem:[%s1 + $0x158] sm:$0xff]
  %v405 = vld [vmem:[%s1 + $0x160] sm:$0xff]
  %v406 = vld [vmem:[%s1 + $0x168] sm:$0xff]
  %v407 = vld [vmem:[%s1 + $0x170] sm:$0xff]
  %v408 = vld [vmem:[%s1 + $0x178] sm:$0xff]
  %v409 = vld [vmem:[%s1 + $0x180] sm:$0xff]
  %v410 = vld [vmem:[%s1 + $0x188] sm:$0xff]
  %v411 = vld [vmem:[%s1 + $0x190] sm:$0xff]
  %v412 = vld [vmem:[%s1 + $0x198] sm:$0xff]
  %v413 = vld [vmem:[%s1 + $0x50] sm:$0xff]
  %414 = vrot.lane.b32.xlu0 %v396, 127
  %v415 = vpop.permute.xlu0 %414
  %v416 = vmul.f32 %v415, %v247
  %417 = vrot.lane.b32.xlu0 %v396, 126
  %v418 = vpop.permute.xlu0 %417
  %vm419 = vcmp.lt.s32.totalorder %v179, 32
  %vm420 = vmand %vm180, %vm419
  %v421 = vsel %vm420, 1, 0
  %v422 = vcvt.s32.f32 %v421
  %v423 = vmul.f32 %v418, %v422
  %425 = vset.pattern.permute.xlu0 24
  %426 = vperm.xlu0 %425, %v413
  %v427 = vpop.permute.xlu0 %426
  %v429 = vsel %vm50, %v413, 0
  %431 = vmatpush.msra.mxu0 0.0
  %432 = vmatpush.msra.mxu0 0.0
  %433 = vmatpush.msra.mxu0 0.0
  %434 = vmatpush.msra.mxu0 0.0
  %435 = vmatpush.msra.mxu0 0.0
  %436 = vmatpush.msra.mxu0 0.0
  %437 = vmatpush.msra.mxu0 0.0
  %438 = vmatpush.msra.mxu0 0.0
  %439 = vmatpush.msra.mxu0 0.0
  %440 = vmatpush.msra.mxu0 0.0
  %441 = vmatpush.msra.mxu0 0.0
  %442 = vmatpush.msra.mxu0 0.0
  %443 = vmatpush.msra.mxu0 0.0
  %444 = vmatpush.msra.mxu0 %v423
  %445 = vmatpush.msra.mxu0 %v416
  %446 = vmatpush.msra.mxu0 %v396
  %447 = vmatmul.f32.gmra.mxu0 %v429
  %v448 = vpop.f32.mrf.mxu0
  %v449 = vadd.f32 %v427, %v448
  %450 = vdwg.mxu0
  %451 = vmatpush.msra.mxu0 %v412
  %452 = vmatpush.msra.mxu0 %v411
  %453 = vmatpush.msra.mxu0 %v410
  %454 = vmatpush.msra.mxu0 %v409
  %455 = vmatpush.msra.mxu0 %v408
  %456 = vmatpush.msra.mxu0 %v407
  %457 = vmatpush.msra.mxu0 %v406
  %458 = vmatpush.msra.mxu0 %v405
  %459 = vmatpush.msra.mxu0 %v404
  %460 = vmatpush.msra.mxu0 %v403
  %461 = vmatpush.msra.mxu0 %v402
  %462 = vmatpush.msra.mxu0 %v401
  %463 = vmatpush.msra.mxu0 %v400
  %464 = vmatpush.msra.mxu0 %v399
  %465 = vmatpush.msra.mxu0 %v398
  %466 = vmatpush.msra.mxu0 %v397
  %467 = vmatmul.f32.gmra.mxu0 %v449
  %v468 = vpop.f32.mrf.mxu0
  %v469 = vadd.f32 0.0, %v468
  %470 = vdwg.mxu0
  %v471 = vmax.f32 %v469, 0.0
  %v472 = vld [vmem:[%s1 + $0x58] sm:$0xff]
  %473 = vrot.lane.b32.xlu0 %v471, 1
  %v474 = vpop.permute.xlu0 %473
  %vm475 = vcmp.lt.s32.totalorder %v29, 16
  %vm476 = vmand %vm30, %vm475
  %v477 = vsel %vm476, 1, 0
  %v478 = vcvt.s32.f32 %v477
  %v479 = vmul.f32 %v474, %v478
  %480 = vrot.lane.b32.xlu0 %v471, 127
  %v481 = vpop.permute.xlu0 %480
  %vm482 = vcmp.lt.s32.totalorder %v38, 16
  %vm483 = vmand %vm39, %vm482
  %v484 = vsel %vm483, 1, 0
  %v485 = vcvt.s32.f32 %v484
  %v486 = vmul.f32 %v481, %v485
  %488 = vset.pattern.permute.xlu0 24
  %489 = vperm.xlu0 %488, %v472
  %v490 = vpop.permute.xlu0 %489
  %v492 = vsel %vm50, %v472, 0
  %494 = vmatpush.msra.mxu0 0.0
  %495 = vmatpush.msra.mxu0 0.0
  %496 = vmatpush.msra.mxu0 0.0
  %497 = vmatpush.msra.mxu0 0.0
  %498 = vmatpush.msra.mxu0 0.0
  %499 = vmatpush.msra.mxu0 0.0
  %500 = vmatpush.msra.mxu0 0.0
  %501 = vmatpush.msra.mxu0 0.0
  %502 = vmatpush.msra.mxu0 0.0
  %503 = vmatpush.msra.mxu0 0.0
  %504 = vmatpush.msra.mxu0 0.0
  %505 = vmatpush.msra.mxu0 0.0
  %506 = vmatpush.msra.mxu0 0.0
  %507 = vmatpush.msra.mxu0 %v486
  %508 = vmatpush.msra.mxu0 %v471
  %509 = vmatpush.msra.mxu0 %v479
  %510 = vmatmul.f32.gmra.mxu0 %v492
  %v511 = vpop.f32.mrf.mxu0
  %v512 = vadd.f32 %v490, %v511
  %513 = vdwg.mxu0
  %514 = vrot.lane.b32.xlu0 %v383, 127
  %v515 = vpop.permute.xlu0 %514
  %v516 = vmul.f32 %v515, %v247
  %v517 = vmax.f32 %v383, %v516
  %518 = vmatpush.msra.mxu0 %v412
  %519 = vmatpush.msra.mxu0 %v411
  %520 = vmatpush.msra.mxu0 %v410
  %521 = vmatpush.msra.mxu0 %v409
  %522 = vmatpush.msra.mxu0 %v408
  %523 = vmatpush.msra.mxu0 %v407
  %524 = vmatpush.msra.mxu0 %v406
  %525 = vmatpush.msra.mxu0 %v405
  %526 = vmatpush.msra.mxu0 %v404
  %527 = vmatpush.msra.mxu0 %v403
  %528 = vmatpush.msra.mxu0 %v402
  %529 = vmatpush.msra.mxu0 %v401
  %530 = vmatpush.msra.mxu0 %v400
  %531 = vmatpush.msra.mxu0 %v399
  %532 = vmatpush.msra.mxu0 %v398
  %533 = vmatpush.msra.mxu0 %v397
  %534 = vmatmul.f32.gmra.mxu0 %v517
  %v535 = vpop.f32.mrf.mxu0
  %v536 = vadd.f32 0.0, %v535
  %537 = vdwg.mxu0
  %v538 = vadd.f32 %v512, %v536
  %v539 = vld [vmem:[%s1 + $0x60] sm:$0xff]
  %541 = vset.pattern.permute.xlu0 0
  %542 = vperm.xlu0 %541, %v539
  %v543 = vpop.permute.xlu0 %542
  %v545 = vmul.f32 %v538, %v543
  %546 = vset.pattern.permute.xlu0 1
  %547 = vperm.xlu0 %546, %v539
  %v548 = vpop.permute.xlu0 %547
  %v550 = vadd.f32 %v545, %v548
  %v551 = vmax.f32 %v550, 0.0
  %v552 = vld [vmem:[%s1 + $0x68] sm:$0xff]
  %v553 = vld [vmem:[%s1 + $0x70] sm:$0xff]
  %554 = vrot.lane.b32.xlu0 %v551, 1
  %v555 = vpop.permute.xlu0 %554
  %v556 = vmul.f32 %v555, %v478
  %557 = vrot.lane.b32.xlu0 %v551, 127
  %v558 = vpop.permute.xlu0 %557
  %v559 = vmul.f32 %v558, %v485
  %561 = vset.pattern.permute.xlu0 24
  %562 = vperm.xlu0 %561, %v552
  %v563 = vpop.permute.xlu0 %562
  %566 = vset.pattern.permute.xlu0 24
  %567 = vperm.xlu0 %566, %v553
  %v568 = vpop.permute.xlu0 %567
  %v570 = vsel %vm50, %v552, 0
  %v572 = vsel %vm50, %v553, 0
  %574 = vmatpush.msra.mxu0 0.0
  %575 = vmatpush.msra.mxu0 0.0
  %576 = vmatpush.msra.mxu0 0.0
  %577 = vmatpush.msra.mxu0 0.0
  %578 = vmatpush.msra.mxu0 0.0
  %579 = vmatpush.msra.mxu0 0.0
  %580 = vmatpush.msra.mxu0 0.0
  %581 = vmatpush.msra.mxu0 0.0
  %582 = vmatpush.msra.mxu0 0.0
  %583 = vmatpush.msra.mxu0 0.0
  %584 = vmatpush.msra.mxu0 0.0
  %585 = vmatpush.msra.mxu0 0.0
  %586 = vmatpush.msra.mxu0 0.0
  %587 = vmatpush.msra.mxu0 %v559
  %588 = vmatpush.msra.mxu0 %v551
  %589 = vmatpush.msra.mxu0 %v556
  %590 = vmatmul.f32.gmra.mxu0 %v570
  %v591 = vpop.f32.mrf.mxu0
  %v592 = vadd.f32 %v563, %v591
  %593 = vmatmul.f32.gmra.mxu0 %v572
  %v594 = vpop.f32.mrf.mxu0
  %v595 = vadd.f32 %v568, %v594
  %596 = vdwg.mxu0
  %v597 = vmax.f32 %v592, 0.0
  %v598 = vmax.f32 %v595, 0.0
  %v599 = vld [vmem:[%s1 + $0x78] sm:$0xff]
  %v600 = vld [vmem:[%s1 + $0x80] sm:$0xff]
  %601 = vrot.lane.b32.xlu0 %v597, 1
  %v602 = vpop.permute.xlu0 %601
  %603 = vrot.lane.b32.xlu0 %v598, 1
  %v604 = vpop.permute.xlu0 %603
  %v605 = vmul.f32 %v602, %v478
  %v606 = vmul.f32 %v604, %v478
  %607 = vrot.lane.b32.xlu0 %v597, 127
  %v608 = vpop.permute.xlu0 %607
  %609 = vrot.lane.b32.xlu0 %v598, 127
  %v610 = vpop.permute.xlu0 %609
  %v611 = vmul.f32 %v608, %v485
  %v612 = vmul.f32 %v610, %v485
  %614 = vset.pattern.permute.xlu0 48
  %615 = vperm.xlu0 %614, %v599
  %v616 = vpop.permute.xlu0 %615
  %619 = vset.pattern.permute.xlu0 48
  %620 = vperm.xlu0 %619, %v600
  %v621 = vpop.permute.xlu0 %620
  %vm623 = vcmask 392192
  %v624 = vsel %vm623, %v599, 0
  %v626 = vsel %vm623, %v600, 0
  %628 = vmatpush.msra.mxu0 0.0
  %629 = vmatpush.msra.mxu0 0.0
  %630 = vmatpush.msra.mxu0 0.0
  %631 = vmatpush.msra.mxu0 0.0
  %632 = vmatpush.msra.mxu0 0.0
  %633 = vmatpush.msra.mxu0 0.0
  %634 = vmatpush.msra.mxu0 0.0
  %635 = vmatpush.msra.mxu0 0.0
  %636 = vmatpush.msra.mxu0 0.0
  %637 = vmatpush.msra.mxu0 0.0
  %638 = vmatpush.msra.mxu0 %v612
  %639 = vmatpush.msra.mxu0 %v611
  %640 = vmatpush.msra.mxu0 %v598
  %641 = vmatpush.msra.mxu0 %v597
  %642 = vmatpush.msra.mxu0 %v606
  %643 = vmatpush.msra.mxu0 %v605
  %644 = vmatmul.f32.gmra.mxu0 %v624
  %v645 = vpop.f32.mrf.mxu0
  %v646 = vadd.f32 %v616, %v645
  %647 = vmatmul.f32.gmra.mxu0 %v626
  %v648 = vpop.f32.mrf.mxu0
  %v649 = vadd.f32 %v621, %v648
  %650 = vdwg.mxu0
  %v651 = vld [vmem:[%s1 + $0x220] sm:$0xff]
  %v652 = vld [vmem:[%s1 + $0x228] sm:$0xff]
  %vm653 = vcmask 64512
  %v655 = vsel %vm653, %v651, 0
  %v658 = vsel %vm653, %v652, 0
  %660 = vmatpush.msra.mxu0 0.0
  %661 = vmatpush.msra.mxu0 0.0
  %662 = vmatpush.msra.mxu0 0.0
  %663 = vmatpush.msra.mxu0 0.0
  %664 = vmatpush.msra.mxu0 0.0
  %665 = vmatpush.msra.mxu0 0.0
  %666 = vmatpush.msra.mxu0 0.0
  %667 = vmatpush.msra.mxu0 0.0
  %668 = vmatpush.msra.mxu0 0.0
  %669 = vmatpush.msra.mxu0 0.0
  %670 = vmatpush.msra.mxu0 0.0
  %671 = vmatpush.msra.mxu0 0.0
  %672 = vmatpush.msra.mxu0 0.0
  %673 = vmatpush.msra.mxu0 0.0
  %674 = vmatpush.msra.mxu0 0.0
  %675 = vmatpush.msra.mxu0 %v538
  %676 = vmatmul.f32.gmra.mxu0 %v655
  %v677 = vpop.f32.mrf.mxu0
  %v678 = vadd.f32 0.0, %v677
  %679 = vmatmul.f32.gmra.mxu0 %v658
  %v680 = vpop.f32.mrf.mxu0
  %v681 = vadd.f32 0.0, %v680
  %682 = vdwg.mxu0
  %v683 = vadd.f32 %v646, %v678
  %v684 = vadd.f32 %v649, %v681
  %v685 = vld [vmem:[%s1 + $0x88] sm:$0xff]
  %v686 = vld [vmem:[%s1 + $0x90] sm:$0xff]
  %688 = vset.pattern.permute.xlu0 0
  %689 = vperm.xlu0 %688, %v685
  %v690 = vpop.permute.xlu0 %689
  %693 = vset.pattern.permute.xlu0 0
  %694 = vperm.xlu0 %693, %v686
  %v695 = vpop.permute.xlu0 %694
  %v697 = vmul.f32 %v683, %v690
  %v698 = vmul.f32 %v684, %v695
  %699 = vset.pattern.permute.xlu0 1
  %700 = vperm.xlu0 %699, %v685
  %v701 = vpop.permute.xlu0 %700
  %703 = vset.pattern.permute.xlu0 1
  %704 = vperm.xlu0 %703, %v686
  %v705 = vpop.permute.xlu0 %704
  %v707 = vadd.f32 %v697, %v701
  %v708 = vadd.f32 %v698, %v705
  %v709 = vmax.f32 %v707, 0.0
  %v710 = vmax.f32 %v708, 0.0
  %v711 = vld [vmem:[%s1 + $0x1a0] sm:$0xff]
  %v712 = vld [vmem:[%s1 + $0x1a8] sm:$0xff]
  %v713 = vld [vmem:[%s1 + $0x1b0] sm:$0xff]
  %v714 = vld [vmem:[%s1 + $0x1b8] sm:$0xff]
  %v715 = vld [vmem:[%s1 + $0x1c0] sm:$0xff]
  %v716 = vld [vmem:[%s1 + $0x1c8] sm:$0xff]
  %v717 = vld [vmem:[%s1 + $0x1d0] sm:$0xff]
  %v718 = vld [vmem:[%s1 + $0x1d8] sm:$0xff]
  %v719 = vld [vmem:[%s1 + $0x1e0] sm:$0xff]
  %v720 = vld [vmem:[%s1 + $0x1e8] sm:$0xff]
  %v721 = vld [vmem:[%s1 + $0x1f0] sm:$0xff]
  %v722 = vld [vmem:[%s1 + $0x1f8] sm:$0xff]
  %v723 = vld [vmem:[%s1 + $0x200] sm:$0xff]
  %v724 = vld [vmem:[%s1 + $0x208] sm:$0xff]
  %v725 = vld [vmem:[%s1 + $0x210] sm:$0xff]
  %v726 = vld [vmem:[%s1 + $0x218] sm:$0xff]
  %727 = vmatpush.msra.mxu0 %v726
  %728 = vmatpush.msra.mxu0 %v725
  %729 = vmatpush.msra.mxu0 %v724
  %730 = vmatpush.msra.mxu0 %v723
  %731 = vmatpush.msra.mxu0 %v722
  %732 = vmatpush.msra.mxu0 %v721
  %733 = vmatpush.msra.mxu0 %v720
  %734 = vmatpush.msra.mxu0 %v719
  %735 = vmatpush.msra.mxu0 %v718
  %736 = vmatpush.msra.mxu0 %v717
  %737 = vmatpush.msra.mxu0 %v716
  %738 = vmatpush.msra.mxu0 %v715
  %739 = vmatpush.msra.mxu0 %v714
  %740 = vmatpush.msra.mxu0 %v713
  %741 = vmatpush.msra.mxu0 %v712
  %742 = vmatpush.msra.mxu0 %v711
  %743 = vmatmul.f32.gmra.mxu0 %v709
  %v744 = vpop.f32.mrf.mxu0
  %v745 = vadd.f32 0.0, %v744
  %746 = vmatmul.f32.gmra.mxu0 %v710
  %v747 = vpop.f32.mrf.mxu0
  %v748 = vadd.f32 0.0, %v747
  %749 = vdwg.mxu0
  %v750 = vld [vmem:[%s1 + $0x98] sm:$0x1f]
  %752 = vset.pattern.permute.xlu0 16
  %753 = vperm.xlu0 %752, %v750
  %v754 = vpop.permute.xlu0 %753
  %vm756 = vcmask 130048
  %v757 = vsel %vm756, %v750, 0
  %759 = vmatpush.msra.mxu0 0.0
  %760 = vmatpush.msra.mxu0 0.0
  %761 = vmatpush.msra.mxu0 0.0
  %762 = vmatpush.msra.mxu0 0.0
  %763 = vmatpush.msra.mxu0 0.0
  %764 = vmatpush.msra.mxu0 0.0
  %765 = vmatpush.msra.mxu0 0.0
  %766 = vmatpush.msra.mxu0 0.0
  %767 = vmatpush.msra.mxu0 0.0
  %768 = vmatpush.msra.mxu0 0.0
  %769 = vmatpush.msra.mxu0 0.0
  %770 = vmatpush.msra.mxu0 0.0
  %771 = vmatpush.msra.mxu0 0.0
  %772 = vmatpush.msra.mxu0 0.0
  %773 = vmatpush.msra.mxu0 %v748
  %774 = vmatpush.msra.mxu0 %v745
  %775 = vmatmul.f32.gmra.mxu0 %v757
  %v776 = vpop.f32.mrf.mxu0
  %v777 = vadd.f32 %v754, %v776
  %778 = vdwg.mxu0
  %vm779 = vcmask 12288
  %780 = vst.msk [vmem:[%s2] sm:$0x1f] %vm779, %v777
  // Predicated region
  $region10: #{adsb_forward_fused.1} parent=0 // pred_check
    _
  $region11: #{adsb_forward_fused.1} parent=0 // pred_check_branch
    %782 = sbr.rel (0) target = $region13
  $region12: #{adsb_forward_fused.1} parent=0 // pred_region
    _
  $region13: #{adsb_forward_fused.1} parent=0 // pred_fallthru
    _
  // Predicated region
  $region14: #{adsb_forward_fused.1} parent=0 // pred_check
    _
  $region15: #{adsb_forward_fused.1} parent=0 // pred_check_branch
    %784 = sbr.rel (0) target = $region17
  $region16: #{adsb_forward_fused.1} parent=0 // pred_region
    _
  $region17: #{adsb_forward_fused.1} parent=0 // pred_fallthru
    _

</llo_original>
